<compile_context>
chip_gen: v6e
topology: v6e:2x2x1
jax: 0.10.0
libtpu: 0.0.40
codegen_flags: <defaults>
</compile_context>

<pallas_src>
import functools
import math

import jax
import jax.numpy as jnp
from jax.experimental import pallas as pl
from jax.experimental.pallas import tpu as pltpu

BN_EPS = 1e-5
KNN_K = 10
OUT_LANES = 128      # lane-dense output width for the smooth_node result
MAX_EDGE_TILE = 512  # per-grid-step edge block (bounds (tile_E, N) intermediates)


def _round_up(x, m):
    return ((x + m - 1) // m) * m


# ----------------------------------------------------------------------------
# Fused per-iteration Pallas kernel (grid over edge blocks)
# ----------------------------------------------------------------------------
def _fused_iter_kernel(
    nodes_ref,   # (N, C)        f32   node coordinates (path|free|collided)
    rowb_ref,    # (N, H)        f32   precomputed  info @ W1[C:, :] + b1
    src_ref,     # (tile_E, 1)   i32   edge source (j)
    dst_ref,     # (tile_E, 1)   i32   edge target (i); == N for dropped/padded
    w1_ref,      # (C, H)        bf16  node_code Linear-1 (coordinate part)
    gamma_ref,   # (1, H)        f32   BatchNorm1d weight
    beta_ref,    # (1, H)        f32   BatchNorm1d bias
    w2_ref,      # (H, H)        bf16  node_code Linear-2
    b2_ref,      # (1, H)        f32
    l0wj_ref,    # (H, H)        bf16  lin_0 L1 folded block for x_j (Wj + Wd)
    l0wi_ref,    # (H, H)        bf16  lin_0 L1 folded block for x_i (Wi - Wd)
    l0b1_ref,    # (1, H)        f32
    l0w2_ref,    # (H, H)        bf16  lin_0 Linear-2
    l0b2_ref,    # (1, H)        f32
    l1w1_ref,    # (H, H)        bf16  lin_1 Linear-1
    l1b1_ref,    # (1, H)        f32
    l1w2_ref,    # (H, H)        bf16  lin_1 Linear-2
    l1b2_ref,    # (1, H)        f32
    snw_ref,     # (H, 128)      bf16  smooth_node weight, zero lane-padded
    snb_ref,     # (1, 128)      f32   smooth_node bias, zero lane-padded
    out_ref,     # (N, 128)      f32   smooth_node(h_nodes), lane-padded
    x_sc,        # (N, H)        f32   node_code output (residual)
    u_sc,        # (N, H)        bf16  x @ Wj'
    v_sc,        # (N, H)        bf16  x @ Wi'
    agg_sc,      # (N, H)        f32   scatter-add accumulator
):
    f32, bf16 = jnp.float32, jnp.bfloat16
    n = nodes_ref.shape[0]
    e_tile = src_ref.shape[0]
    eb = pl.program_id(0)
    last = pl.num_programs(0) - 1

    # ---- once per iteration (first edge block): node_code + hoisted lin_0-L1
    @pl.when(eb == 0)
    def _():
        # node_code: Linear -> BatchNorm1d (batch statistics) -> ReLU -> Linear
        # The fixed `info` one-hot columns were folded into rowb (exact).
        h1 = jnp.dot(nodes_ref[...].astype(bf16), w1_ref[...],
                     preferred_element_type=f32) + rowb_ref[...]
        mean = jnp.mean(h1, axis=0, keepdims=True)                    # f32 stats
        var = jnp.mean(jnp.square(h1 - mean), axis=0, keepdims=True)  # biased var
        h1 = (h1 - mean) * jax.lax.rsqrt(var + BN_EPS) * gamma_ref[...] + beta_ref[...]
        h1 = jnp.maximum(h1, 0.0)
        x = jnp.dot(h1.astype(bf16), w2_ref[...],
                    preferred_element_type=f32) + b2_ref[...]         # (N, H) f32
        x_sc[...] = x

        # lin_0 layer-1 hoisted to node granularity (E >> N):
        #   msg_pre[e] = x[src_e] @ Wj' + x[dst_e] @ Wi' + b
        x_bf = x.astype(bf16)
        u_sc[...] = jnp.dot(x_bf, l0wj_ref[...],
                            preferred_element_type=f32).astype(bf16)  # (N, H)
        v_sc[...] = jnp.dot(x_bf, l0wi_ref[...],
                            preferred_element_type=f32).astype(bf16)  # (N, H)
        agg_sc[...] = jnp.zeros_like(agg_sc)

    # ---- per edge block: gather, message MLP, scatter-add -------------------
    edge_iota = jax.lax.broadcasted_iota(jnp.int32, (e_tile, n), 1)
    oh_src = (edge_iota == src_ref[...]).astype(bf16)                 # (tile_E, N)
    oh_dst = (edge_iota == dst_ref[...]).astype(bf16)                 # (tile_E, N)

    m1 = (jnp.dot(oh_src, u_sc[...], preferred_element_type=f32)
          + jnp.dot(oh_dst, v_sc[...], preferred_element_type=f32)
          + l0b1_ref[...])
    m1 = jnp.maximum(m1, 0.0)
    msg = jnp.dot(m1.astype(bf16), l0w2_ref[...],
                  preferred_element_type=f32) + l0b2_ref[...]         # (tile_E, H)

    # scatter-add: reuse oh_dst, contract over the edge axis (oh_dst^T @ msg).
    # Edges whose dst == N (duplicates / padding) have an all-zero one-hot row
    # and contribute nothing.
    agg_sc[...] += jax.lax.dot_general(
        oh_dst, msg.astype(bf16),
        dimension_numbers=(((0,), (0,)), ((), ())),
        preferred_element_type=f32)                                   # (N, H)

    # ---- once per iteration (last edge block): update MLP + smooth_node -----
    @pl.when(eb == last)
    def _():
        g1 = jnp.dot(agg_sc[...].astype(bf16), l1w1_ref[...],
                     preferred_element_type=f32) + l1b1_ref[...]
        g1 = jnp.maximum(g1, 0.0)
        h_nodes = x_sc[...] + jnp.dot(g1.astype(bf16), l1w2_ref[...],
                                      preferred_element_type=f32) + l1b2_ref[...]
        out_ref[...] = (jnp.dot(h_nodes.astype(bf16), snw_ref[...],
                                preferred_element_type=f32) + snb_ref[...])


def _fused_iteration(prep, nodes, src_col, dst_col, tile_e):
    """One smoothing iteration: node_code + MPNN + smooth_node, fused."""
    n, c = nodes.shape
    h = prep["w2"].shape[0]
    e_full = src_col.shape[0]
    n_blocks = e_full // tile_e

    const = lambda shape: pl.BlockSpec(shape, lambda e: (0, 0))
    edge_spec = pl.BlockSpec((tile_e, 1), lambda e: (e, 0))

    in_specs = [
        const((n, c)),            # nodes
        const((n, h)),            # row_bias
        edge_spec,                # src
        edge_spec,                # dst
        const((c, h)),            # w1
        const((1, h)),            # gamma
        const((1, h)),            # beta
        const((h, h)),            # w2
        const((1, h)),            # b2
        const((h, h)),            # l0_wj (folded)
        const((h, h)),            # l0_wi (folded)
        const((1, h)),            # l0_b1
        const((h, h)),            # l0_w2
        const((1, h)),            # l0_b2
        const((h, h)),            # l1_w1
        const((1, h)),            # l1_b1
        const((h, h)),            # l1_w2
        const((1, h)),            # l1_b2
        const((h, OUT_LANES)),    # sn_w (lane-padded)
        const((1, OUT_LANES)),    # sn_b (lane-padded)
    ]

    out = pl.pallas_call(
        _fused_iter_kernel,
        out_shape=jax.ShapeDtypeStruct((n, OUT_LANES), jnp.float32),
        grid_spec=pltpu.PrefetchScalarGridSpec(
            num_scalar_prefetch=0,
            grid=(n_blocks,),
            in_specs=in_specs,
            out_specs=pl.BlockSpec((n, OUT_LANES), lambda e: (0, 0)),
            scratch_shapes=[
                pltpu.VMEM((n, h), jnp.float32),    # x_sc
                pltpu.VMEM((n, h), jnp.bfloat16),   # u_sc
                pltpu.VMEM((n, h), jnp.bfloat16),   # v_sc
                pltpu.VMEM((n, h), jnp.float32),    # agg_sc
            ],
        ),
        compiler_params=pltpu.CompilerParams(
            # edge-block axis is an accumulation axis -> sequential
            dimension_semantics=("arbitrary",)),
    )(
        nodes, prep["row_bias"], src_col, dst_col,
        prep["w1"], prep["gamma"], prep["beta"], prep["w2"], prep["b2"],
        prep["l0_wj"], prep["l0_wi"], prep["l0_b1"], prep["l0_w2"], prep["l0_b2"],
        prep["l1_w1"], prep["l1_b1"], prep["l1_w2"], prep["l1_b2"],
        prep["sn_w"], prep["sn_b"],
    )
    return out


# ----------------------------------------------------------------------------
# Parameter preparation (once per forward call, outside the loop):
# bf16 weight casts, lin_0 weight fold, info-column folding, lane padding.
# ----------------------------------------------------------------------------
def _prepare_params(params, p, f_cnt, n, config_size, embed_size):
    nc1_w, nc1_b, gamma, beta, nc2_w, nc2_b = params["node_code"]
    l0a_w, l0a_b, l0b_w, l0b_b = params["process"]["lin_0"]
    l1a_w, l1a_b, l1b_w, l1b_b = params["process"]["lin_1"]
    sn_w, sn_b = params["smooth_node"]

    # info is a fixed one-hot indicator -> fold info @ W1[C:, :] + b1 into a
    # loop-invariant per-row bias (exact in f32).
    info = (
        jnp.zeros((n, 3), jnp.float32)
        .at[:p, 0].set(1.0)
        .at[p:p + f_cnt, 1].set(1.0)
        .at[p + f_cnt:, 2].set(1.0)
    )
    row_bias = info @ nc1_w[config_size:] + nc1_b            # (N, H) f32

    # Lane-pad smooth_node to 128 output lanes (dense stores); sliced in JAX.
    sn_w_p = jnp.zeros((embed_size, OUT_LANES), jnp.float32).at[:, :config_size].set(sn_w)
    sn_b_p = jnp.zeros((1, OUT_LANES), jnp.float32).at[:, :config_size].set(sn_b)

    # Fold the (x_j - x_i) weight block of lin_0 layer-1:
    #   z @ [Wd; Wj; Wi] = x_j @ (Wj + Wd) + x_i @ (Wi - Wd)   (exact in f32)
    h = embed_size
    wd, wj, wi = l0a_w[:h], l0a_w[h:2 * h], l0a_w[2 * h:]

    bf = lambda a: a.astype(jnp.bfloat16)
    return {
        "row_bias": row_bias,
        "w1": bf(nc1_w[:config_size]), "gamma": gamma, "beta": beta,
        "w2": bf(nc2_w), "b2": nc2_b,
        "l0_wj": bf(wj + wd), "l0_wi": bf(wi - wd),
        "l0_b1": l0a_b, "l0_w2": bf(l0b_w), "l0_b2": l0b_b,
        "l1_w1": bf(l1a_w), "l1_b1": l1a_b, "l1_w2": bf(l1b_w), "l1_b2": l1b_b,
        "sn_w": bf(sn_w_p), "sn_b": sn_b_p,
    }


# ----------------------------------------------------------------------------
# Graph glue (data-dependent indexing stays in plain JAX)
# ----------------------------------------------------------------------------
def knn_edges(candidates, queries, k):
    """For each query row, k nearest candidate rows (euclidean).
    Returns edge_index (2, Q*k): row 0 = candidate index, row 1 = query index
    (already matches torch_cluster.knn(...).flip(0))."""
    # TODO(synk): top-k nearest-neighbor selection has no clean Pallas equivalent; done in JAX.
    d2 = (
        jnp.sum(queries * queries, axis=1, keepdims=True)
        - 2.0 * queries @ candidates.T
        + jnp.sum(candidates * candidates, axis=1)[None, :]
    )
    _, idx = jax.lax.top_k(-d2, k)                      # (Q, k) candidate indices
    src = idx.reshape(-1).astype(jnp.int32)
    dst = jnp.repeat(jnp.arange(queries.shape[0], dtype=jnp.int32), k)
    return jnp.stack([src, dst], axis=0)


def coalesce_edges(edge_index, num_nodes):
    """Deduplicate (src, dst) pairs (torch_sparse.coalesce with value=None).
    Duplicates are kept in the arrays but their dst is set to num_nodes, which
    makes their one-hot scatter row all-zero inside the kernel."""
    # TODO(synk): duplicate detection needs a sort; done with jnp.argsort in JAX.
    src, dst = edge_index[0], edge_index[1]
    key = src * num_nodes + dst
    order = jnp.argsort(key)
    src_s = src[order]
    dst_s = dst[order]
    key_s = key[order]
    dup = jnp.concatenate([jnp.array([False]), key_s[1:] == key_s[:-1]])
    dst_s = jnp.where(dup, num_nodes, dst_s)
    return src_s.astype(jnp.int32), dst_s.astype(jnp.int32)


# ----------------------------------------------------------------------------
# ModelSmoother forward
# ----------------------------------------------------------------------------
def model_smoother_forward(params, path, free, collided, obstacles, edge_index,
                           loop=10, scale=1.0):
    del obstacles  # not used by the reference forward
    path = path / scale
    free = free / scale
    collided = collided / scale

    p = path.shape[0]
    f_cnt = free.shape[0]
    tail = jnp.concatenate([free, collided], axis=0)   # never changes
    n = p + tail.shape[0]
    c = path.shape[1]
    h = params["node_code"][4].shape[1]

    prep = _prepare_params(params, p, f_cnt, n, c, h)

    edge_index = edge_index.astype(jnp.int32)
    e_total = edge_index.shape[1] + p * KNN_K
    # pad to a multiple of 16 (bf16 sublane packing) and of the edge tile
    tile_e = min(MAX_EDGE_TILE, _round_up(e_total, 16))
    e_full = _round_up(e_total, tile_e)
    e_pad = e_full - e_total

    def body(_, path_cur):
        nodes = jnp.concatenate([path_cur, tail], axis=0)
        new_edges = knn_edges(tail, path_cur, KNN_K)
        new_edges = new_edges.at[0].add(p)
        total_edges = jnp.concatenate([edge_index, new_edges], axis=1)
        src, dst = coalesce_edges(total_edges, n)
        # pad to the edge-tile multiple; padded edges get dst == n (dropped)
        src = jnp.concatenate([src, jnp.zeros((e_pad,), jnp.int32)])
        dst = jnp.concatenate([dst, jnp.full((e_pad,), n, jnp.int32)])

        out = _fused_iteration(
            prep, nodes, src.reshape(e_full, 1), dst.reshape(e_full, 1), tile_e)
        smoothed = out[:p, :c]
        return path_cur.at[1:-1].set(smoothed[1:-1])

    path = jax.lax.fori_loop(0, loop, body, path)
    return path * scale


# ----------------------------------------------------------------------------
# Deterministic parameter initialization (PyTorch nn.Linear default init)
# ----------------------------------------------------------------------------
def _linear_init(key, fan_in, fan_out):
    kw, kb = jax.random.split(key)
    bound = 1.0 / math.sqrt(fan_in)
    w = jax.random.uniform(kw, (fan_in, fan_out), jnp.float32, -bound, bound)
    b = jax.random.uniform(kb, (1, fan_out), jnp.float32, -bound, bound)
    return w, b


def init_params(key, config_size, embed_size):
    keys = jax.random.split(key, 6)
    nc1_w, nc1_b = _linear_init(keys[0], config_size + 3, embed_size)
    nc2_w, nc2_b = _linear_init(keys[1], embed_size, embed_size)
    gamma = jnp.ones((1, embed_size), jnp.float32)
    beta = jnp.zeros((1, embed_size), jnp.float32)

    l0a_w, l0a_b = _linear_init(keys[2], embed_size * 3, embed_size)
    l0b_w, l0b_b = _linear_init(keys[3], embed_size, embed_size)
    l1a_w, l1a_b = _linear_init(keys[4], embed_size, embed_size)
    l1b_w, l1b_b = _linear_init(keys[5], embed_size, embed_size)

    sn_w, sn_b = _linear_init(jax.random.fold_in(key, 99), embed_size, config_size)

    return {
        "node_code": (nc1_w, nc1_b, gamma, beta, nc2_w, nc2_b),
        "process": {
            "lin_0": (l0a_w, l0a_b, l0b_w, l0b_b),
            "lin_1": (l1a_w, l1a_b, l1b_w, l1b_b),
        },
        "smooth_node": (sn_w, sn_b),
    }


# ----------------------------------------------------------------------------
# Main
# ----------------------------------------------------------------------------
if __name__ == "__main__":
    config_size = 4
    obs_size = 8
    embed_size = 32
    scale = 1.0
    loop = 3

    key = jax.random.PRNGKey(0)
    k_par, k_path, k_free, k_coll, k_obs, k_edge = jax.random.split(key, 6)

    params = init_params(k_par, config_size, embed_size)

    n_path, n_free, n_coll = 8, 16, 8
    n_total = n_path + n_free + n_coll

    path = jax.random.normal(k_path, (n_path, config_size), jnp.float32)
    free = jax.random.normal(k_free, (n_free, config_size), jnp.float32)
    collided = jax.random.normal(k_coll, (n_coll, config_size), jnp.float32)
    obstacles = jax.random.normal(k_obs, (3, obs_size), jnp.float32)  # unused by forward
    edge_index = jax.random.randint(k_edge, (2, 20), 0, n_total, jnp.int32)

    fwd = jax.jit(
        functools.partial(model_smoother_forward, params, loop=loop, scale=scale)
    )
    out = fwd(path, free, collided, obstacles, edge_index)
    jax.block_until_ready(out)

    assert out.shape == (n_path, config_size)
    assert jnp.all(jnp.isfinite(out))
    print("KERNEL_OK")
</pallas_src>

<mosaic_0001>
module attributes {stable_mosaic.version = 11 : i64} {
  func.func @_fused_iter_kernel(%arg0: i32, %arg1: memref<32x4xf32, #tpu.memory_space<vmem>>, %arg2: memref<32x32xf32, #tpu.memory_space<vmem>>, %arg3: memref<112x1xi32, #tpu.memory_space<vmem>>, %arg4: memref<112x1xi32, #tpu.memory_space<vmem>>, %arg5: memref<4x32xbf16, #tpu.memory_space<vmem>>, %arg6: memref<1x32xf32, #tpu.memory_space<vmem>>, %arg7: memref<1x32xf32, #tpu.memory_space<vmem>>, %arg8: memref<32x32xbf16, #tpu.memory_space<vmem>>, %arg9: memref<1x32xf32, #tpu.memory_space<vmem>>, %arg10: memref<32x32xbf16, #tpu.memory_space<vmem>>, %arg11: memref<32x32xbf16, #tpu.memory_space<vmem>>, %arg12: memref<1x32xf32, #tpu.memory_space<vmem>>, %arg13: memref<32x32xbf16, #tpu.memory_space<vmem>>, %arg14: memref<1x32xf32, #tpu.memory_space<vmem>>, %arg15: memref<32x32xbf16, #tpu.memory_space<vmem>>, %arg16: memref<1x32xf32, #tpu.memory_space<vmem>>, %arg17: memref<32x32xbf16, #tpu.memory_space<vmem>>, %arg18: memref<1x32xf32, #tpu.memory_space<vmem>>, %arg19: memref<32x128xbf16, #tpu.memory_space<vmem>>, %arg20: memref<1x128xf32, #tpu.memory_space<vmem>>, %arg21: memref<32x128xf32, #tpu.memory_space<vmem>>, %arg22: memref<32x32xf32, #tpu.memory_space<vmem>>, %arg23: memref<32x32xbf16, #tpu.memory_space<vmem>>, %arg24: memref<32x32xbf16, #tpu.memory_space<vmem>>, %arg25: memref<32x32xf32, #tpu.memory_space<vmem>>) attributes {dimension_semantics = [#tpu.dimension_semantics<arbitrary>], iteration_bounds = array<i64: 1>, scalar_prefetch = 0 : i64, scratch_operands = 4 : i64, tpu.core_type = #tpu.core_type<tc>, window_params = [{pipeline_mode = #tpu.pipeline_mode<synchronous>, transform_indices = @transform_0, window_bounds = array<i64: 32, 4>}, {pipeline_mode = #tpu.pipeline_mode<synchronous>, transform_indices = @transform_1, window_bounds = array<i64: 32, 32>}, {transform_indices = @transform_2, window_bounds = array<i64: 112, 1>}, {transform_indices = @transform_3, window_bounds = array<i64: 112, 1>}, {pipeline_mode = #tpu.pipeline_mode<synchronous>, transform_indices = @transform_4, window_bounds = array<i64: 4, 32>}, {pipeline_mode = #tpu.pipeline_mode<synchronous>, transform_indices = @transform_5, window_bounds = array<i64: 1, 32>}, {pipeline_mode = #tpu.pipeline_mode<synchronous>, transform_indices = @transform_6, window_bounds = array<i64: 1, 32>}, {pipeline_mode = #tpu.pipeline_mode<synchronous>, transform_indices = @transform_7, window_bounds = array<i64: 32, 32>}, {pipeline_mode = #tpu.pipeline_mode<synchronous>, transform_indices = @transform_8, window_bounds = array<i64: 1, 32>}, {pipeline_mode = #tpu.pipeline_mode<synchronous>, transform_indices = @transform_9, window_bounds = array<i64: 32, 32>}, {pipeline_mode = #tpu.pipeline_mode<synchronous>, transform_indices = @transform_10, window_bounds = array<i64: 32, 32>}, {pipeline_mode = #tpu.pipeline_mode<synchronous>, transform_indices = @transform_11, window_bounds = array<i64: 1, 32>}, {pipeline_mode = #tpu.pipeline_mode<synchronous>, transform_indices = @transform_12, window_bounds = array<i64: 32, 32>}, {pipeline_mode = #tpu.pipeline_mode<synchronous>, transform_indices = @transform_13, window_bounds = array<i64: 1, 32>}, {pipeline_mode = #tpu.pipeline_mode<synchronous>, transform_indices = @transform_14, window_bounds = array<i64: 32, 32>}, {pipeline_mode = #tpu.pipeline_mode<synchronous>, transform_indices = @transform_15, window_bounds = array<i64: 1, 32>}, {pipeline_mode = #tpu.pipeline_mode<synchronous>, transform_indices = @transform_16, window_bounds = array<i64: 32, 32>}, {pipeline_mode = #tpu.pipeline_mode<synchronous>, transform_indices = @transform_17, window_bounds = array<i64: 1, 32>}, {pipeline_mode = #tpu.pipeline_mode<synchronous>, transform_indices = @transform_18, window_bounds = array<i64: 32, 128>}, {pipeline_mode = #tpu.pipeline_mode<synchronous>, transform_indices = @transform_19, window_bounds = array<i64: 1, 128>}, {pipeline_mode = #tpu.pipeline_mode<synchronous>, transform_indices = @transform_20, window_bounds = array<i64: 32, 128>}]} {
    %c0_i32 = arith.constant 0 : i32
    %0 = arith.cmpi eq, %arg0, %c0_i32 : i32
    %1 = arith.extui %0 : i1 to i32
    %c0_i32_0 = arith.constant 0 : i32
    %2 = arith.cmpi ne, %1, %c0_i32_0 : i32
    scf.if %2 {
      %c0_24 = arith.constant 0 : index
      %c0_25 = arith.constant 0 : index
      %40 = vector.load %arg1[%c0_24, %c0_25] : memref<32x4xf32, #tpu.memory_space<vmem>>, vector<32x4xf32>
      %41 = arith.truncf %40 : vector<32x4xf32> to vector<32x4xbf16>
      %c0_26 = arith.constant 0 : index
      %c0_27 = arith.constant 0 : index
      %42 = vector.load %arg5[%c0_26, %c0_27] : memref<4x32xbf16, #tpu.memory_space<vmem>>, vector<4x32xbf16>
      %cst_28 = arith.constant dense<0.000000e+00> : vector<32x32xf32>
      %43 = tpu.matmul %41, %42, %cst_28 {dimension_numbers = #tpu.dot_dimension_numbers<[1], [0], [0], [1], [0, 0, 1, 1], [], []>} : vector<32x4xbf16>, vector<4x32xbf16>, vector<32x32xf32> -> vector<32x32xf32>
      %c0_29 = arith.constant 0 : index
      %c0_30 = arith.constant 0 : index
      %44 = vector.load %arg2[%c0_29, %c0_30] : memref<32x32xf32, #tpu.memory_space<vmem>>, vector<32x32xf32>
      %45 = arith.addf %43, %44 : vector<32x32xf32>
      %cst_31 = arith.constant dense<0.000000e+00> : vector<32xf32>
      %46 = vector.multi_reduction <add>, %45, %cst_31 [0] : vector<32x32xf32> to vector<32xf32>
      %47 = vector.shape_cast %46 : vector<32xf32> to vector<1x32xf32>
      %cst_32 = arith.constant 3.200000e+01 : f32
      %48 = vector.broadcast %cst_32 : f32 to vector<1x32xf32>
      %49 = arith.divf %47, %48 : vector<1x32xf32>
      %50 = vector.broadcast %49 : vector<1x32xf32> to vector<32x32xf32>
      %51 = arith.subf %45, %50 : vector<32x32xf32>
      %52 = arith.mulf %51, %51 : vector<32x32xf32>
      %cst_33 = arith.constant dense<0.000000e+00> : vector<32xf32>
      %53 = vector.multi_reduction <add>, %52, %cst_33 [0] : vector<32x32xf32> to vector<32xf32>
      %54 = vector.shape_cast %53 : vector<32xf32> to vector<1x32xf32>
      %cst_34 = arith.constant 3.200000e+01 : f32
      %55 = vector.broadcast %cst_34 : f32 to vector<1x32xf32>
      %56 = arith.divf %54, %55 : vector<1x32xf32>
      %57 = vector.broadcast %49 : vector<1x32xf32> to vector<32x32xf32>
      %58 = arith.subf %45, %57 : vector<32x32xf32>
      %cst_35 = arith.constant 9.99999974E-6 : f32
      %59 = vector.broadcast %cst_35 : f32 to vector<1x32xf32>
      %60 = arith.addf %56, %59 : vector<1x32xf32>
      %61 = math.rsqrt %60 : vector<1x32xf32>
      %62 = vector.broadcast %61 : vector<1x32xf32> to vector<32x32xf32>
      %63 = arith.mulf %58, %62 : vector<32x32xf32>
      %c0_36 = arith.constant 0 : index
      %c0_37 = arith.constant 0 : index
      %64 = vector.load %arg6[%c0_36, %c0_37] : memref<1x32xf32, #tpu.memory_space<vmem>>, vector<1x32xf32>
      %65 = vector.broadcast %64 : vector<1x32xf32> to vector<32x32xf32>
      %66 = arith.mulf %63, %65 : vector<32x32xf32>
      %c0_38 = arith.constant 0 : index
      %c0_39 = arith.constant 0 : index
      %67 = vector.load %arg7[%c0_38, %c0_39] : memref<1x32xf32, #tpu.memory_space<vmem>>, vector<1x32xf32>
      %68 = vector.broadcast %67 : vector<1x32xf32> to vector<32x32xf32>
      %69 = arith.addf %66, %68 : vector<32x32xf32>
      %cst_40 = arith.constant 0.000000e+00 : f32
      %70 = vector.broadcast %cst_40 : f32 to vector<32x32xf32>
      %71 = arith.maximumf %69, %70 : vector<32x32xf32>
      %72 = arith.truncf %71 : vector<32x32xf32> to vector<32x32xbf16>
      %c0_41 = arith.constant 0 : index
      %c0_42 = arith.constant 0 : index
      %73 = vector.load %arg8[%c0_41, %c0_42] : memref<32x32xbf16, #tpu.memory_space<vmem>>, vector<32x32xbf16>
      %cst_43 = arith.constant dense<0.000000e+00> : vector<32x32xf32>
      %74 = tpu.matmul %72, %73, %cst_43 {dimension_numbers = #tpu.dot_dimension_numbers<[1], [0], [0], [1], [0, 0, 1, 1], [], []>} : vector<32x32xbf16>, vector<32x32xbf16>, vector<32x32xf32> -> vector<32x32xf32>
      %c0_44 = arith.constant 0 : index
      %c0_45 = arith.constant 0 : index
      %75 = vector.load %arg9[%c0_44, %c0_45] : memref<1x32xf32, #tpu.memory_space<vmem>>, vector<1x32xf32>
      %76 = vector.broadcast %75 : vector<1x32xf32> to vector<32x32xf32>
      %77 = arith.addf %74, %76 : vector<32x32xf32>
      %c0_46 = arith.constant 0 : index
      %c0_47 = arith.constant 0 : index
      %78 = vector.load %arg22[%c0_46, %c0_47] : memref<32x32xf32, #tpu.memory_space<vmem>>, vector<32x32xf32>
      tpu.vector_store %arg22[%c0_46, %c0_47], %77 {strides = array<i32>} : memref<32x32xf32, #tpu.memory_space<vmem>>, vector<32x32xf32>,
      %79 = arith.truncf %77 : vector<32x32xf32> to vector<32x32xbf16>
      %c0_48 = arith.constant 0 : index
      %c0_49 = arith.constant 0 : index
      %80 = vector.load %arg10[%c0_48, %c0_49] : memref<32x32xbf16, #tpu.memory_space<vmem>>, vector<32x32xbf16>
      %cst_50 = arith.constant dense<0.000000e+00> : vector<32x32xf32>
      %81 = tpu.matmul %79, %80, %cst_50 {dimension_numbers = #tpu.dot_dimension_numbers<[1], [0], [0], [1], [0, 0, 1, 1], [], []>} : vector<32x32xbf16>, vector<32x32xbf16>, vector<32x32xf32> -> vector<32x32xf32>
      %82 = arith.truncf %81 : vector<32x32xf32> to vector<32x32xbf16>
      %c0_51 = arith.constant 0 : index
      %c0_52 = arith.constant 0 : index
      %83 = vector.load %arg23[%c0_51, %c0_52] : memref<32x32xbf16, #tpu.memory_space<vmem>>, vector<32x32xbf16>
      tpu.vector_store %arg23[%c0_51, %c0_52], %82 {strides = array<i32>} : memref<32x32xbf16, #tpu.memory_space<vmem>>, vector<32x32xbf16>,
      %c0_53 = arith.constant 0 : index
      %c0_54 = arith.constant 0 : index
      %84 = vector.load %arg11[%c0_53, %c0_54] : memref<32x32xbf16, #tpu.memory_space<vmem>>, vector<32x32xbf16>
      %cst_55 = arith.constant dense<0.000000e+00> : vector<32x32xf32>
      %85 = tpu.matmul %79, %84, %cst_55 {dimension_numbers = #tpu.dot_dimension_numbers<[1], [0], [0], [1], [0, 0, 1, 1], [], []>} : vector<32x32xbf16>, vector<32x32xbf16>, vector<32x32xf32> -> vector<32x32xf32>
      %86 = arith.truncf %85 : vector<32x32xf32> to vector<32x32xbf16>
      %c0_56 = arith.constant 0 : index
      %c0_57 = arith.constant 0 : index
      %87 = vector.load %arg24[%c0_56, %c0_57] : memref<32x32xbf16, #tpu.memory_space<vmem>>, vector<32x32xbf16>
      tpu.vector_store %arg24[%c0_56, %c0_57], %86 {strides = array<i32>} : memref<32x32xbf16, #tpu.memory_space<vmem>>, vector<32x32xbf16>,
      %cst_58 = arith.constant 0.000000e+00 : f32
      %88 = vector.broadcast %cst_58 : f32 to vector<32x32xf32>
      %c0_59 = arith.constant 0 : index
      %c0_60 = arith.constant 0 : index
      %89 = vector.load %arg25[%c0_59, %c0_60] : memref<32x32xf32, #tpu.memory_space<vmem>>, vector<32x32xf32>
      tpu.vector_store %arg25[%c0_59, %c0_60], %88 {strides = array<i32>} : memref<32x32xf32, #tpu.memory_space<vmem>>, vector<32x32xf32>,
    } else {
    }
    %3 = tpu.iota {dimensions = array<i32: 1>} : vector<112x32xi32>
    %c0 = arith.constant 0 : index
    %c0_1 = arith.constant 0 : index
    %4 = vector.load %arg3[%c0, %c0_1] : memref<112x1xi32, #tpu.memory_space<vmem>>, vector<112x1xi32>
    %5 = vector.broadcast %4 : vector<112x1xi32> to vector<112x32xi32>
    %6 = arith.cmpi eq, %3, %5 : vector<112x32xi32>
    %7 = arith.extui %6 : vector<112x32xi1> to vector<112x32xi32>
    %8 = arith.sitofp %7 : vector<112x32xi32> to vector<112x32xf32>
    %9 = arith.truncf %8 : vector<112x32xf32> to vector<112x32xbf16>
    %c0_2 = arith.constant 0 : index
    %c0_3 = arith.constant 0 : index
    %10 = vector.load %arg4[%c0_2, %c0_3] : memref<112x1xi32, #tpu.memory_space<vmem>>, vector<112x1xi32>
    %11 = vector.broadcast %10 : vector<112x1xi32> to vector<112x32xi32>
    %12 = arith.cmpi eq, %3, %11 : vector<112x32xi32>
    %13 = arith.extui %12 : vector<112x32xi1> to vector<112x32xi32>
    %14 = arith.sitofp %13 : vector<112x32xi32> to vector<112x32xf32>
    %15 = arith.truncf %14 : vector<112x32xf32> to vector<112x32xbf16>
    %c0_4 = arith.constant 0 : index
    %c0_5 = arith.constant 0 : index
    %16 = vector.load %arg23[%c0_4, %c0_5] : memref<32x32xbf16, #tpu.memory_space<vmem>>, vector<32x32xbf16>
    %cst = arith.constant dense<0.000000e+00> : vector<112x32xf32>
    %17 = tpu.matmul %9, %16, %cst {dimension_numbers = #tpu.dot_dimension_numbers<[1], [0], [0], [1], [0, 0, 1, 1], [], []>} : vector<112x32xbf16>, vector<32x32xbf16>, vector<112x32xf32> -> vector<112x32xf32>
    %c0_6 = arith.constant 0 : index
    %c0_7 = arith.constant 0 : index
    %18 = vector.load %arg24[%c0_6, %c0_7] : memref<32x32xbf16, #tpu.memory_space<vmem>>, vector<32x32xbf16>
    %cst_8 = arith.constant dense<0.000000e+00> : vector<112x32xf32>
    %19 = tpu.matmul %15, %18, %cst_8 {dimension_numbers = #tpu.dot_dimension_numbers<[1], [0], [0], [1], [0, 0, 1, 1], [], []>} : vector<112x32xbf16>, vector<32x32xbf16>, vector<112x32xf32> -> vector<112x32xf32>
    %20 = arith.addf %17, %19 : vector<112x32xf32>
    %c0_9 = arith.constant 0 : index
    %c0_10 = arith.constant 0 : index
    %21 = vector.load %arg12[%c0_9, %c0_10] : memref<1x32xf32, #tpu.memory_space<vmem>>, vector<1x32xf32>
    %22 = vector.broadcast %21 : vector<1x32xf32> to vector<112x32xf32>
    %23 = arith.addf %20, %22 : vector<112x32xf32>
    %cst_11 = arith.constant 0.000000e+00 : f32
    %24 = vector.broadcast %cst_11 : f32 to vector<112x32xf32>
    %25 = arith.maximumf %23, %24 : vector<112x32xf32>
    %26 = arith.truncf %25 : vector<112x32xf32> to vector<112x32xbf16>
    %c0_12 = arith.constant 0 : index
    %c0_13 = arith.constant 0 : index
    %27 = vector.load %arg13[%c0_12, %c0_13] : memref<32x32xbf16, #tpu.memory_space<vmem>>, vector<32x32xbf16>
    %cst_14 = arith.constant dense<0.000000e+00> : vector<112x32xf32>
    %28 = tpu.matmul %26, %27, %cst_14 {dimension_numbers = #tpu.dot_dimension_numbers<[1], [0], [0], [1], [0, 0, 1, 1], [], []>} : vector<112x32xbf16>, vector<32x32xbf16>, vector<112x32xf32> -> vector<112x32xf32>
    %c0_15 = arith.constant 0 : index
    %c0_16 = arith.constant 0 : index
    %29 = vector.load %arg14[%c0_15, %c0_16] : memref<1x32xf32, #tpu.memory_space<vmem>>, vector<1x32xf32>
    %30 = vector.broadcast %29 : vector<1x32xf32> to vector<112x32xf32>
    %31 = arith.addf %28, %30 : vector<112x32xf32>
    %c0_17 = arith.constant 0 : index
    %c0_18 = arith.constant 0 : index
    %32 = vector.load %arg25[%c0_17, %c0_18] : memref<32x32xf32, #tpu.memory_space<vmem>>, vector<32x32xf32>
    %33 = arith.truncf %31 : vector<112x32xf32> to vector<112x32xbf16>
    %cst_19 = arith.constant dense<0.000000e+00> : vector<32x32xf32>
    %34 = tpu.matmul %15, %33, %cst_19 {dimension_numbers = #tpu.dot_dimension_numbers<[0], [0], [1], [1], [0, 1, 1, 1], [], []>} : vector<112x32xbf16>, vector<112x32xbf16>, vector<32x32xf32> -> vector<32x32xf32>
    %35 = arith.addf %32, %34 : vector<32x32xf32>
    %c0_20 = arith.constant 0 : index
    %c0_21 = arith.constant 0 : index
    %36 = vector.load %arg25[%c0_20, %c0_21] : memref<32x32xf32, #tpu.memory_space<vmem>>, vector<32x32xf32>
    tpu.vector_store %arg25[%c0_20, %c0_21], %35 {strides = array<i32>} : memref<32x32xf32, #tpu.memory_space<vmem>>, vector<32x32xf32>,
    %c0_i32_22 = arith.constant 0 : i32
    %37 = arith.cmpi eq, %arg0, %c0_i32_22 : i32
    %38 = arith.extui %37 : i1 to i32
    %c0_i32_23 = arith.constant 0 : i32
    %39 = arith.cmpi ne, %38, %c0_i32_23 : i32
    scf.if %39 {
      %c0_24 = arith.constant 0 : index
      %c0_25 = arith.constant 0 : index
      %40 = vector.load %arg25[%c0_24, %c0_25] : memref<32x32xf32, #tpu.memory_space<vmem>>, vector<32x32xf32>
      %41 = arith.truncf %40 : vector<32x32xf32> to vector<32x32xbf16>
      %c0_26 = arith.constant 0 : index
      %c0_27 = arith.constant 0 : index
      %42 = vector.load %arg15[%c0_26, %c0_27] : memref<32x32xbf16, #tpu.memory_space<vmem>>, vector<32x32xbf16>
      %cst_28 = arith.constant dense<0.000000e+00> : vector<32x32xf32>
      %43 = tpu.matmul %41, %42, %cst_28 {dimension_numbers = #tpu.dot_dimension_numbers<[1], [0], [0], [1], [0, 0, 1, 1], [], []>} : vector<32x32xbf16>, vector<32x32xbf16>, vector<32x32xf32> -> vector<32x32xf32>
      %c0_29 = arith.constant 0 : index
      %c0_30 = arith.constant 0 : index
      %44 = vector.load %arg16[%c0_29, %c0_30] : memref<1x32xf32, #tpu.memory_space<vmem>>, vector<1x32xf32>
      %45 = vector.broadcast %44 : vector<1x32xf32> to vector<32x32xf32>
      %46 = arith.addf %43, %45 : vector<32x32xf32>
      %cst_31 = arith.constant 0.000000e+00 : f32
      %47 = vector.broadcast %cst_31 : f32 to vector<32x32xf32>
      %48 = arith.maximumf %46, %47 : vector<32x32xf32>
      %c0_32 = arith.constant 0 : index
      %c0_33 = arith.constant 0 : index
      %49 = vector.load %arg22[%c0_32, %c0_33] : memref<32x32xf32, #tpu.memory_space<vmem>>, vector<32x32xf32>
      %50 = arith.truncf %48 : vector<32x32xf32> to vector<32x32xbf16>
      %c0_34 = arith.constant 0 : index
      %c0_35 = arith.constant 0 : index
      %51 = vector.load %arg17[%c0_34, %c0_35] : memref<32x32xbf16, #tpu.memory_space<vmem>>, vector<32x32xbf16>
      %cst_36 = arith.constant dense<0.000000e+00> : vector<32x32xf32>
      %52 = tpu.matmul %50, %51, %cst_36 {dimension_numbers = #tpu.dot_dimension_numbers<[1], [0], [0], [1], [0, 0, 1, 1], [], []>} : vector<32x32xbf16>, vector<32x32xbf16>, vector<32x32xf32> -> vector<32x32xf32>
      %53 = arith.addf %49, %52 : vector<32x32xf32>
      %c0_37 = arith.constant 0 : index
      %c0_38 = arith.constant 0 : index
      %54 = vector.load %arg18[%c0_37, %c0_38] : memref<1x32xf32, #tpu.memory_space<vmem>>, vector<1x32xf32>
      %55 = vector.broadcast %54 : vector<1x32xf32> to vector<32x32xf32>
      %56 = arith.addf %53, %55 : vector<32x32xf32>
      %57 = arith.truncf %56 : vector<32x32xf32> to vector<32x32xbf16>
      %c0_39 = arith.constant 0 : index
      %c0_40 = arith.constant 0 : index
      %58 = vector.load %arg19[%c0_39, %c0_40] : memref<32x128xbf16, #tpu.memory_space<vmem>>, vector<32x128xbf16>
      %cst_41 = arith.constant dense<0.000000e+00> : vector<32x128xf32>
      %59 = tpu.matmul %57, %58, %cst_41 {dimension_numbers = #tpu.dot_dimension_numbers<[1], [0], [0], [1], [0, 0, 1, 1], [], []>} : vector<32x32xbf16>, vector<32x128xbf16>, vector<32x128xf32> -> vector<32x128xf32>
      %c0_42 = arith.constant 0 : index
      %c0_43 = arith.constant 0 : index
      %60 = vector.load %arg20[%c0_42, %c0_43] : memref<1x128xf32, #tpu.memory_space<vmem>>, vector<1x128xf32>
      %61 = vector.broadcast %60 : vector<1x128xf32> to vector<32x128xf32>
      %62 = arith.addf %59, %61 : vector<32x128xf32>
      %c0_44 = arith.constant 0 : index
      %c0_45 = arith.constant 0 : index
      %63 = vector.load %arg21[%c0_44, %c0_45] : memref<32x128xf32, #tpu.memory_space<vmem>>, vector<32x128xf32>
      tpu.vector_store %arg21[%c0_44, %c0_45], %62 {strides = array<i32>} : memref<32x128xf32, #tpu.memory_space<vmem>>, vector<32x128xf32>,
    } else {
    }
    return
  }
  func.func @transform_0(%arg0: i32) -> (i32, i32) {
    %c0_i32 = arith.constant 0 : i32
    %c0_i32_0 = arith.constant 0 : i32
    %c0_i32_1 = arith.constant 0 : i32
    return %c0_i32, %c0_i32_0 : i32, i32
  }
  func.func @transform_1(%arg0: i32) -> (i32, i32) {
    %c0_i32 = arith.constant 0 : i32
    %c0_i32_0 = arith.constant 0 : i32
    %c0_i32_1 = arith.constant 0 : i32
    return %c0_i32, %c0_i32_0 : i32, i32
  }
  func.func @transform_2(%arg0: i32) -> (i32, i32) {
    %c0_i32 = arith.constant 0 : i32
    %c0_i32_0 = arith.constant 0 : i32
    return %arg0, %c0_i32 : i32, i32
  }
  func.func @transform_3(%arg0: i32) -> (i32, i32) {
    %c0_i32 = arith.constant 0 : i32
    %c0_i32_0 = arith.constant 0 : i32
    return %arg0, %c0_i32 : i32, i32
  }
  func.func @transform_4(%arg0: i32) -> (i32, i32) {
    %c0_i32 = arith.constant 0 : i32
    %c0_i32_0 = arith.constant 0 : i32
    %c0_i32_1 = arith.constant 0 : i32
    return %c0_i32, %c0_i32_0 : i32, i32
  }
  func.func @transform_5(%arg0: i32) -> (i32, i32) {
    %c0_i32 = arith.constant 0 : i32
    %c0_i32_0 = arith.constant 0 : i32
    %c0_i32_1 = arith.constant 0 : i32
    return %c0_i32, %c0_i32_0 : i32, i32
  }
  func.func @transform_6(%arg0: i32) -> (i32, i32) {
    %c0_i32 = arith.constant 0 : i32
    %c0_i32_0 = arith.constant 0 : i32
    %c0_i32_1 = arith.constant 0 : i32
    return %c0_i32, %c0_i32_0 : i32, i32
  }
  func.func @transform_7(%arg0: i32) -> (i32, i32) {
    %c0_i32 = arith.constant 0 : i32
    %c0_i32_0 = arith.constant 0 : i32
    %c0_i32_1 = arith.constant 0 : i32
    return %c0_i32, %c0_i32_0 : i32, i32
  }
  func.func @transform_8(%arg0: i32) -> (i32, i32) {
    %c0_i32 = arith.constant 0 : i32
    %c0_i32_0 = arith.constant 0 : i32
    %c0_i32_1 = arith.constant 0 : i32
    return %c0_i32, %c0_i32_0 : i32, i32
  }
  func.func @transform_9(%arg0: i32) -> (i32, i32) {
    %c0_i32 = arith.constant 0 : i32
    %c0_i32_0 = arith.constant 0 : i32
    %c0_i32_1 = arith.constant 0 : i32
    return %c0_i32, %c0_i32_0 : i32, i32
  }
  func.func @transform_10(%arg0: i32) -> (i32, i32) {
    %c0_i32 = arith.constant 0 : i32
    %c0_i32_0 = arith.constant 0 : i32
    %c0_i32_1 = arith.constant 0 : i32
    return %c0_i32, %c0_i32_0 : i32, i32
  }
  func.func @transform_11(%arg0: i32) -> (i32, i32) {
    %c0_i32 = arith.constant 0 : i32
    %c0_i32_0 = arith.constant 0 : i32
    %c0_i32_1 = arith.constant 0 : i32
    return %c0_i32, %c0_i32_0 : i32, i32
  }
  func.func @transform_12(%arg0: i32) -> (i32, i32) {
    %c0_i32 = arith.constant 0 : i32
    %c0_i32_0 = arith.constant 0 : i32
    %c0_i32_1 = arith.constant 0 : i32
    return %c0_i32, %c0_i32_0 : i32, i32
  }
  func.func @transform_13(%arg0: i32) -> (i32, i32) {
    %c0_i32 = arith.constant 0 : i32
    %c0_i32_0 = arith.constant 0 : i32
    %c0_i32_1 = arith.constant 0 : i32
    return %c0_i32, %c0_i32_0 : i32, i32
  }
  func.func @transform_14(%arg0: i32) -> (i32, i32) {
    %c0_i32 = arith.constant 0 : i32
    %c0_i32_0 = arith.constant 0 : i32
    %c0_i32_1 = arith.constant 0 : i32
    return %c0_i32, %c0_i32_0 : i32, i32
  }
  func.func @transform_15(%arg0: i32) -> (i32, i32) {
    %c0_i32 = arith.constant 0 : i32
    %c0_i32_0 = arith.constant 0 : i32
    %c0_i32_1 = arith.constant 0 : i32
    return %c0_i32, %c0_i32_0 : i32, i32
  }
  func.func @transform_16(%arg0: i32) -> (i32, i32) {
    %c0_i32 = arith.constant 0 : i32
    %c0_i32_0 = arith.constant 0 : i32
    %c0_i32_1 = arith.constant 0 : i32
    return %c0_i32, %c0_i32_0 : i32, i32
  }
  func.func @transform_17(%arg0: i32) -> (i32, i32) {
    %c0_i32 = arith.constant 0 : i32
    %c0_i32_0 = arith.constant 0 : i32
    %c0_i32_1 = arith.constant 0 : i32
    return %c0_i32, %c0_i32_0 : i32, i32
  }
  func.func @transform_18(%arg0: i32) -> (i32, i32) {
    %c0_i32 = arith.constant 0 : i32
    %c0_i32_0 = arith.constant 0 : i32
    %c0_i32_1 = arith.constant 0 : i32
    return %c0_i32, %c0_i32_0 : i32, i32
  }
  func.func @transform_19(%arg0: i32) -> (i32, i32) {
    %c0_i32 = arith.constant 0 : i32
    %c0_i32_0 = arith.constant 0 : i32
    %c0_i32_1 = arith.constant 0 : i32
    return %c0_i32, %c0_i32_0 : i32, i32
  }
  func.func @transform_20(%arg0: i32) -> (i32, i32) {
    %c0_i32 = arith.constant 0 : i32
    %c0_i32_0 = arith.constant 0 : i32
    %c0_i32_1 = arith.constant 0 : i32
    return %c0_i32, %c0_i32_0 : i32, i32
  }
}

</mosaic_0001>

<llo_original>
// kernel: closed_call.8
$region0: #{closed_call.8}
  #allocation0 [shape = 'u32[]', space=smem, size = 0x4, offset = 0x4, fixed_abs, tag = 'smem constant byte address 0x4 - core index']
  #allocation1 [shape = 'u32[144,128]{1,0:T(1,128)}', space=vmem, size = 0x12000, scoped, tag = 'internal scratch']
  #allocation2 [shape = 'f32[32,32]{1,0:T(8,128)}', space=vmem, size = 0x4000, scoped, tag = 'scratch operand']
  #allocation3 [shape = 'bf16[32,32]{1,0:T(8,128)(2,1)}', space=vmem, size = 0x2000, scoped, tag = 'scratch operand']
  #allocation4 [shape = 'bf16[32,32]{1,0:T(8,128)(2,1)}', space=vmem, size = 0x2000, scoped, tag = 'scratch operand']
  #allocation5 [shape = 'f32[32,32]{1,0:T(8,128)}', space=vmem, size = 0x4000, scoped, tag = 'scratch operand']
  %s0 = inlined_call_operand.vmem [shape: f32[32,4], index: 0, kind: input, shape index: {}]
  %s1 = inlined_call_operand.vmem [shape: f32[32,32], index: 1, kind: input, shape index: {}]
  %s2 = inlined_call_operand.vmem [shape: s32[112,1], index: 2, kind: input, shape index: {}]
  %s3 = inlined_call_operand.vmem [shape: s32[112,1], index: 3, kind: input, shape index: {}]
  %s4 = inlined_call_operand.vmem [shape: bf16[4,32], index: 4, kind: input, shape index: {}]
  %s5 = inlined_call_operand.vmem [shape: f32[1,32], index: 5, kind: input, shape index: {}]
  %s6 = inlined_call_operand.vmem [shape: f32[1,32], index: 6, kind: input, shape index: {}]
  %s7 = inlined_call_operand.vmem [shape: bf16[32,32], index: 7, kind: input, shape index: {}]
  %s8 = inlined_call_operand.vmem [shape: f32[1,32], index: 8, kind: input, shape index: {}]
  %s9 = inlined_call_operand.vmem [shape: bf16[32,32], index: 9, kind: input, shape index: {}]
  %s10 = inlined_call_operand.vmem [shape: bf16[32,32], index: 10, kind: input, shape index: {}]
  %s11 = inlined_call_operand.vmem [shape: f32[1,32], index: 11, kind: input, shape index: {}]
  %s12 = inlined_call_operand.vmem [shape: bf16[32,32], index: 12, kind: input, shape index: {}]
  %s13 = inlined_call_operand.vmem [shape: f32[1,32], index: 13, kind: input, shape index: {}]
  %s14 = inlined_call_operand.vmem [shape: bf16[32,32], index: 14, kind: input, shape index: {}]
  %s15 = inlined_call_operand.vmem [shape: f32[1,32], index: 15, kind: input, shape index: {}]
  %s16 = inlined_call_operand.vmem [shape: bf16[32,32], index: 16, kind: input, shape index: {}]
  %s17 = inlined_call_operand.vmem [shape: f32[1,32], index: 17, kind: input, shape index: {}]
  %s18 = inlined_call_operand.vmem [shape: bf16[32,128], index: 18, kind: input, shape index: {}]
  %s19 = inlined_call_operand.vmem [shape: f32[1,128], index: 19, kind: input, shape index: {}]
  %s20 = inlined_call_operand.vmem [shape: f32[32,128], index: 20, kind: output, shape index: {}]
  %s21 = sld [smem:[#allocation0]]
  $region98: #{closed_call.8} parent=0
    _
  %s23 = ssub.s32 1, %s21
  %s24 = scalar_select 0, %s23, %s21
  // Predicated region
  $region2: #{closed_call.8} parent=0 // pred_check
    _
  $region3: #{closed_call.8} parent=0 // pred_check_branch
    %26 = sbr.rel (0) target = $region5
  $region4: #{closed_call.8} parent=0 // pred_region
    _
  $region5: #{closed_call.8} parent=0 // pred_fallthru
    _
  // Predicated region
  $region6: #{closed_call.8} parent=0 // pred_check
    _
  $region7: #{closed_call.8} parent=0 // pred_check_branch
    %28 = sbr.rel (0) target = $region9
  $region8: #{closed_call.8} parent=0 // pred_region
    _
  $region9: #{closed_call.8} parent=0 // pred_fallthru
    _
  // Predicated region
  $region10: #{closed_call.8} parent=0 // pred_check
    _
  $region11: #{closed_call.8} parent=0 // pred_check_branch
    %30 = sbr.rel (0) target = $region13
  $region12: #{closed_call.8} parent=0 // pred_region
    _
  $region13: #{closed_call.8} parent=0 // pred_fallthru
    _
  // Predicated region
  $region14: #{closed_call.8} parent=0 // pred_check
    _
  $region15: #{closed_call.8} parent=0 // pred_check_branch
    %32 = sbr.rel (0) target = $region17
  $region16: #{closed_call.8} parent=0 // pred_region
    _
  $region17: #{closed_call.8} parent=0 // pred_fallthru
    _
  // Predicated region
  $region18: #{closed_call.8} parent=0 // pred_check
    _
  $region19: #{closed_call.8} parent=0 // pred_check_branch
    %34 = sbr.rel (0) target = $region21
  $region20: #{closed_call.8} parent=0 // pred_region
    _
  $region21: #{closed_call.8} parent=0 // pred_fallthru
    _
  // Predicated region
  $region22: #{closed_call.8} parent=0 // pred_check
    _
  $region23: #{closed_call.8} parent=0 // pred_check_branch
    %36 = sbr.rel (0) target = $region25
  $region24: #{closed_call.8} parent=0 // pred_region
    _
  $region25: #{closed_call.8} parent=0 // pred_fallthru
    _
  // Predicated region
  $region26: #{closed_call.8} parent=0 // pred_check
    _
  $region27: #{closed_call.8} parent=0 // pred_check_branch
    %38 = sbr.rel (0) target = $region29
  $region28: #{closed_call.8} parent=0 // pred_region
    _
  $region29: #{closed_call.8} parent=0 // pred_fallthru
    _
  // Predicated region
  $region30: #{closed_call.8} parent=0 // pred_check
    _
  $region31: #{closed_call.8} parent=0 // pred_check_branch
    %40 = sbr.rel (0) target = $region33
  $region32: #{closed_call.8} parent=0 // pred_region
    _
  $region33: #{closed_call.8} parent=0 // pred_fallthru
    _
  // Predicated region
  $region34: #{closed_call.8} parent=0 // pred_check
    _
  $region35: #{closed_call.8} parent=0 // pred_check_branch
    %42 = sbr.rel (0) target = $region37
  $region36: #{closed_call.8} parent=0 // pred_region
    _
  $region37: #{closed_call.8} parent=0 // pred_fallthru
    _
  // Predicated region
  $region38: #{closed_call.8} parent=0 // pred_check
    _
  $region39: #{closed_call.8} parent=0 // pred_check_branch
    %44 = sbr.rel (0) target = $region41
  $region40: #{closed_call.8} parent=0 // pred_region
    _
  $region41: #{closed_call.8} parent=0 // pred_fallthru
    _
  // Predicated region
  $region42: #{closed_call.8} parent=0 // pred_check
    _
  $region43: #{closed_call.8} parent=0 // pred_check_branch
    %46 = sbr.rel (0) target = $region45
  $region44: #{closed_call.8} parent=0 // pred_region
    _
  $region45: #{closed_call.8} parent=0 // pred_fallthru
    _
  // Predicated region
  $region46: #{closed_call.8} parent=0 // pred_check
    _
  $region47: #{closed_call.8} parent=0 // pred_check_branch
    %48 = sbr.rel (0) target = $region49
  $region48: #{closed_call.8} parent=0 // pred_region
    _
  $region49: #{closed_call.8} parent=0 // pred_fallthru
    _
  // Predicated region
  $region50: #{closed_call.8} parent=0 // pred_check
    _
  $region51: #{closed_call.8} parent=0 // pred_check_branch
    %50 = sbr.rel (0) target = $region53
  $region52: #{closed_call.8} parent=0 // pred_region
    _
  $region53: #{closed_call.8} parent=0 // pred_fallthru
    _
  // Predicated region
  $region54: #{closed_call.8} parent=0 // pred_check
    _
  $region55: #{closed_call.8} parent=0 // pred_check_branch
    %52 = sbr.rel (0) target = $region57
  $region56: #{closed_call.8} parent=0 // pred_region
    _
  $region57: #{closed_call.8} parent=0 // pred_fallthru
    _
  // Predicated region
  $region58: #{closed_call.8} parent=0 // pred_check
    _
  $region59: #{closed_call.8} parent=0 // pred_check_branch
    %54 = sbr.rel (0) target = $region61
  $region60: #{closed_call.8} parent=0 // pred_region
    _
  $region61: #{closed_call.8} parent=0 // pred_fallthru
    _
  // Predicated region
  $region62: #{closed_call.8} parent=0 // pred_check
    _
  $region63: #{closed_call.8} parent=0 // pred_check_branch
    %56 = sbr.rel (0) target = $region65
  $region64: #{closed_call.8} parent=0 // pred_region
    _
  $region65: #{closed_call.8} parent=0 // pred_fallthru
    _
  // Predicated region
  $region66: #{closed_call.8} parent=0 // pred_check
    _
  $region67: #{closed_call.8} parent=0 // pred_check_branch
    %58 = sbr.rel (0) target = $region69
  $region68: #{closed_call.8} parent=0 // pred_region
    _
  $region69: #{closed_call.8} parent=0 // pred_fallthru
    _
  // Predicated region
  $region70: #{closed_call.8} parent=0 // pred_check
    _
  $region71: #{closed_call.8} parent=0 // pred_check_branch
    %60 = sbr.rel (0) target = $region73
  $region72: #{closed_call.8} parent=0 // pred_region
    _
  $region73: #{closed_call.8} parent=0 // pred_fallthru
    _
  // Predicated region
  $region74: #{closed_call.8} parent=0 // pred_check
    _
  $region75: #{closed_call.8} parent=0 // pred_check_branch
    %62 = sbr.rel (0) target = $region77
  $region76: #{closed_call.8} parent=0 // pred_region
    _
  $region77: #{closed_call.8} parent=0 // pred_fallthru
    _
  // Predicated region
  $region78: #{closed_call.8} parent=0 // pred_check
    _
  $region79: #{closed_call.8} parent=0 // pred_check_branch
    %64 = sbr.rel (0) target = $region81
  $region80: #{closed_call.8} parent=0 // pred_region
    _
  $region81: #{closed_call.8} parent=0 // pred_fallthru
    _
  %p66 = scmp.eq.s32.totalorder 0, 0
  // Predicated region
  $region82: #{closed_call.8} parent=0 // pred_check
    %p67 = pneg %p66
  $region83: #{closed_call.8} parent=0 // pred_check_branch
    %69 = sbr.rel (%p67) target = $region85
  $region84: #{closed_call.8} parent=0 // pred_region
    %v70 = vld [vmem:[%s0] sm:$0xff]
    %v71 = vld [vmem:[%s0 + $0x8] sm:$0xff]
    %v72 = vld [vmem:[%s0 + $0x10] sm:$0xff]
    %v73 = vld [vmem:[%s0 + $0x18] sm:$0xff]
    %v74 = vpack.c.bf16 %v71, %v70
    %v75 = vpack.c.bf16 %v73, %v72
    %v76 = vld [vmem:[%s4] sm:$0x3]
    %v77 = vld [vmem:[%s1] sm:$0xff]
    %v78 = vld [vmem:[%s1 + $0x8] sm:$0xff]
    %v79 = vld [vmem:[%s1 + $0x10] sm:$0xff]
    %v80 = vld [vmem:[%s1 + $0x18] sm:$0xff]
    %vm81 = vcmask 31744
    %v83 = vsel %vm81, %v74, 0
    %v86 = vsel %vm81, %v75, 0
    %vm88 = vcmask 1041408
    %v90 = vsel %vm88, %v76, 0
    %92 = vmatprep.subr.bf16.mxu0 0
    %93 = vmatpush1.bf16.msra.mxu0 0
    %94 = vmatprep.subr.bf16.mxu0 0
    %95 = vmatpush1.bf16.msra.mxu0 0
    %96 = vmatprep.subr.bf16.mxu0 0
    %97 = vmatpush1.bf16.msra.mxu0 0
    %98 = vmatprep.subr.bf16.mxu0 0
    %99 = vmatpush1.bf16.msra.mxu0 0
    %100 = vmatprep.subr.bf16.mxu0 0
    %101 = vmatpush1.bf16.msra.mxu0 0
    %102 = vmatprep.subr.bf16.mxu0 0
    %103 = vmatpush1.bf16.msra.mxu0 0
    %104 = vmatprep.subr.bf16.mxu0 0
    %105 = vmatpush1.bf16.msra.mxu0 0
    %106 = vmatprep.subr.bf16.mxu0 0
    %107 = vmatpush1.bf16.msra.mxu0 %v90
    %108 = vmatprep.subr.bf16.mxu0 0
    %109 = vmatpush2.bf16.msra.mxu0 0
    %110 = vmatprep.subr.bf16.mxu0 0
    %111 = vmatpush2.bf16.msra.mxu0 0
    %112 = vmatprep.subr.bf16.mxu0 0
    %113 = vmatpush2.bf16.msra.mxu0 0
    %114 = vmatprep.subr.bf16.mxu0 0
    %115 = vmatpush2.bf16.msra.mxu0 0
    %116 = vmatprep.subr.bf16.mxu0 0
    %117 = vmatpush2.bf16.msra.mxu0 0
    %118 = vmatprep.subr.bf16.mxu0 0
    %119 = vmatpush2.bf16.msra.mxu0 0
    %120 = vmatprep.subr.bf16.mxu0 0
    %121 = vmatpush2.bf16.msra.mxu0 0
    %122 = vmatprep.subr.bf16.mxu0 0
    %123 = vmatpush2.bf16.msra.mxu0 0
    %124 = vmatprep.mubr.bf16.mxu0 0
    %125 = vmatmul.mubr.bf16.gmra.mxu0 %v83
    %v126 = vpop.f32.mrf.mxu0
    %v127 = vadd.f32 %v77, %v126
    %v128 = vpop.f32.mrf.mxu0
    %v129 = vpop.f32.mrf.mxu0
    %v130 = vadd.f32 %v78, %v129
    %v131 = vpop.f32.mrf.mxu0
    %132 = vmatprep.mubr.bf16.mxu0 0
    %133 = vmatmul.mubr.bf16.gmra.mxu0 %v86
    %v134 = vpop.f32.mrf.mxu0
    %v135 = vadd.f32 %v79, %v134
    %v136 = vpop.f32.mrf.mxu0
    %v137 = vpop.f32.mrf.mxu0
    %v138 = vadd.f32 %v80, %v137
    %v139 = vpop.f32.mrf.mxu0
    %140 = vdwg.mxu0
    %vm141 = vcmask 261120
    %v142 = vsel %vm141, %v127, 0.0
    %v143 = vsel %vm141, %v130, 0.0
    %v144 = vadd.f32 %v142, %v143
    %v145 = vsel %vm141, %v135, 0.0
    %v146 = vadd.f32 %v144, %v145
    %v147 = vsel %vm141, %v138, 0.0
    %v148 = vadd.f32 %v146, %v147
    %v149 = vrot.slane %v148, 4
    %v150 = vadd.f32 %v148, %v149
    %v151 = vrot.slane %v150, 2
    %v152 = vadd.f32 %v150, %v151
    %v153 = vrot.slane %v152, 1
    %v154 = vadd.f32 %v152, %v153
    %v155 = vrcp.pop 32.0
    %v156 = vmul.f32 %v154, %v155
    %v157 = vsub.f32 %v127, %v156
    %v158 = vsub.f32 %v130, %v156
    %v159 = vsub.f32 %v135, %v156
    %v160 = vsub.f32 %v138, %v156
    %v161 = vmul.f32 %v157, %v157
    %v162 = vmul.f32 %v158, %v158
    %v163 = vmul.f32 %v159, %v159
    %v164 = vmul.f32 %v160, %v160
    %v165 = vsel %vm141, %v161, 0.0
    %v166 = vsel %vm141, %v162, 0.0
    %v167 = vadd.f32 %v165, %v166
    %v168 = vsel %vm141, %v163, 0.0
    %v169 = vadd.f32 %v167, %v168
    %v170 = vsel %vm141, %v164, 0.0
    %v171 = vadd.f32 %v169, %v170
    %v172 = vrot.slane %v171, 4
    %v173 = vadd.f32 %v171, %v172
    %v174 = vrot.slane %v173, 2
    %v175 = vadd.f32 %v173, %v174
    %v176 = vrot.slane %v175, 1
    %v177 = vadd.f32 %v175, %v176
    %v178 = vmul.f32 %v177, %v155
    %v179 = vadd.f32 %v178, 1e-05
    %v180 = vrsqrt.pop %v179
    %v181 = vmul.f32 %v157, %v180
    %v182 = vmul.f32 %v158, %v180
    %v183 = vmul.f32 %v159, %v180
    %v184 = vmul.f32 %v160, %v180
    %v185 = vld [vmem:[%s5] sm:$0x1]
    %v187 = vlaneseq
    %v188 = vshrl.u32 %v187, 7
    %v189 = vsub.s32 0, %v188
    %v190 = vrot.slane %v185, %v189
    %v192 = vmul.f32 %v181, %v190
    %v193 = vmul.f32 %v182, %v190
    %v194 = vmul.f32 %v183, %v190
    %v195 = vmul.f32 %v184, %v190
    %v196 = vld [vmem:[%s6] sm:$0x1]
    %v198 = vlaneseq
    %v199 = vshrl.u32 %v198, 7
    %v200 = vsub.s32 0, %v199
    %v201 = vrot.slane %v196, %v200
    %v203 = vadd.f32 %v192, %v201
    %v204 = vadd.f32 %v193, %v201
    %v205 = vadd.f32 %v194, %v201
    %v206 = vadd.f32 %v195, %v201
    %v207 = vmax.f32 %v203, 0.0
    %v208 = vmax.f32 %v204, 0.0
    %v209 = vmax.f32 %v205, 0.0
    %v210 = vmax.f32 %v206, 0.0
    %v211 = vpack.c.bf16 %v208, %v207
    %v212 = vpack.c.bf16 %v210, %v209
    %v213 = vld [vmem:[%s7] sm:$0xf]
    %v214 = vld [vmem:[%s7 + $0x4] sm:$0xf]
    %v215 = vld [vmem:[%s7 + $0x8] sm:$0xf]
    %v216 = vld [vmem:[%s7 + $0xc] sm:$0xf]
    %v217 = vld [vmem:[%s8] sm:$0x1]
    %v219 = vlaneseq
    %v220 = vshrl.u32 %v219, 7
    %v221 = vsub.s32 0, %v220
    %v222 = vrot.slane %v217, %v221
    %v228 = vunpack.c.l.b16 %v213
    %v229 = vunpack.c.l.b16 %v214
    %v230 = vunpack.c.l.b16 %v215
    %v231 = vunpack.c.l.b16 %v216
    %v232 = vpack.c.b16 %v229, %v228
    %v233 = vpack.c.b16 %v231, %v230
    %v237 = vsel %vm141, %v211, 0
    %v240 = vsel %vm141, %v212, 0
    %242 = vmatprep.subr.bf16.mxu0 0
    %243 = vmatpush1.bf16.msra.mxu0 0
    %244 = vmatprep.subr.bf16.mxu0 0
    %245 = vmatpush1.bf16.msra.mxu0 0
    %246 = vmatprep.subr.bf16.mxu0 0
    %247 = vmatpush1.bf16.msra.mxu0 0
    %248 = vmatprep.subr.bf16.mxu0 0
    %249 = vmatpush1.bf16.msra.mxu0 0
    %250 = vmatprep.subr.bf16.mxu0 0
    %251 = vmatpush1.bf16.msra.mxu0 0
    %252 = vmatprep.subr.bf16.mxu0 0
    %253 = vmatpush1.bf16.msra.mxu0 0
    %254 = vmatprep.subr.bf16.mxu0 0
    %255 = vmatpush1.bf16.msra.mxu0 %v233
    %256 = vmatprep.subr.bf16.mxu0 0
    %257 = vmatpush1.bf16.msra.mxu0 %v232
    %258 = vmatprep.subr.bf16.mxu0 0
    %259 = vmatpush2.bf16.msra.mxu0 0
    %260 = vmatprep.subr.bf16.mxu0 0
    %261 = vmatpush2.bf16.msra.mxu0 0
    %262 = vmatprep.subr.bf16.mxu0 0
    %263 = vmatpush2.bf16.msra.mxu0 0
    %264 = vmatprep.subr.bf16.mxu0 0
    %265 = vmatpush2.bf16.msra.mxu0 0
    %266 = vmatprep.subr.bf16.mxu0 0
    %267 = vmatpush2.bf16.msra.mxu0 0
    %268 = vmatprep.subr.bf16.mxu0 0
    %269 = vmatpush2.bf16.msra.mxu0 0
    %270 = vmatprep.subr.bf16.mxu0 0
    %271 = vmatpush2.bf16.msra.mxu0 0
    %272 = vmatprep.subr.bf16.mxu0 0
    %273 = vmatpush2.bf16.msra.mxu0 0
    %274 = vmatprep.mubr.bf16.mxu0 0
    %275 = vmatmul.mubr.bf16.gmra.mxu0 %v237
    %v276 = vpop.f32.mrf.mxu0
    %v277 = vadd.f32 %v222, %v276
    %v278 = vpop.f32.mrf.mxu0
    %v279 = vpop.f32.mrf.mxu0
    %v280 = vadd.f32 %v222, %v279
    %v281 = vpop.f32.mrf.mxu0
    %282 = vmatprep.mubr.bf16.mxu0 0
    %283 = vmatmul.mubr.bf16.gmra.mxu0 %v240
    %v284 = vpop.f32.mrf.mxu0
    %v285 = vadd.f32 %v222, %v284
    %v286 = vpop.f32.mrf.mxu0
    %v287 = vpop.f32.mrf.mxu0
    %v288 = vadd.f32 %v222, %v287
    %v289 = vpop.f32.mrf.mxu0
    %290 = vdwg.mxu0
    %291 = vst.msk [vmem:[#allocation2] sm:$0xff] %vm141, %v277
    %292 = vst.msk [vmem:[#allocation2 + $0x8] sm:$0xff] %vm141, %v280
    %293 = vst.msk [vmem:[#allocation2 + $0x10] sm:$0xff] %vm141, %v285
    %294 = vst.msk [vmem:[#allocation2 + $0x18] sm:$0xff] %vm141, %v288
    %v295 = vpack.c.bf16 %v280, %v277
    %v296 = vpack.c.bf16 %v288, %v285
    %v297 = vld [vmem:[%s9] sm:$0xf]
    %v298 = vld [vmem:[%s9 + $0x4] sm:$0xf]
    %v299 = vld [vmem:[%s9 + $0x8] sm:$0xf]
    %v300 = vld [vmem:[%s9 + $0xc] sm:$0xf]
    %v305 = vunpack.c.l.b16 %v297
    %v306 = vunpack.c.l.b16 %v298
    %v307 = vunpack.c.l.b16 %v299
    %v308 = vunpack.c.l.b16 %v300
    %v309 = vpack.c.b16 %v306, %v305
    %v310 = vpack.c.b16 %v308, %v307
    %v314 = vsel %vm141, %v295, 0
    %v317 = vsel %vm141, %v296, 0
    %319 = vmatprep.subr.bf16.mxu0 0
    %320 = vmatpush1.bf16.msra.mxu0 0
    %321 = vmatprep.subr.bf16.mxu0 0
    %322 = vmatpush1.bf16.msra.mxu0 0
    %323 = vmatprep.subr.bf16.mxu0 0
    %324 = vmatpush1.bf16.msra.mxu0 0
    %325 = vmatprep.subr.bf16.mxu0 0
    %326 = vmatpush1.bf16.msra.mxu0 0
    %327 = vmatprep.subr.bf16.mxu0 0
    %328 = vmatpush1.bf16.msra.mxu0 0
    %329 = vmatprep.subr.bf16.mxu0 0
    %330 = vmatpush1.bf16.msra.mxu0 0
    %331 = vmatprep.subr.bf16.mxu0 0
    %332 = vmatpush1.bf16.msra.mxu0 %v310
    %333 = vmatprep.subr.bf16.mxu0 0
    %334 = vmatpush1.bf16.msra.mxu0 %v309
    %335 = vmatprep.subr.bf16.mxu0 0
    %336 = vmatpush2.bf16.msra.mxu0 0
    %337 = vmatprep.subr.bf16.mxu0 0
    %338 = vmatpush2.bf16.msra.mxu0 0
    %339 = vmatprep.subr.bf16.mxu0 0
    %340 = vmatpush2.bf16.msra.mxu0 0
    %341 = vmatprep.subr.bf16.mxu0 0
    %342 = vmatpush2.bf16.msra.mxu0 0
    %343 = vmatprep.subr.bf16.mxu0 0
    %344 = vmatpush2.bf16.msra.mxu0 0
    %345 = vmatprep.subr.bf16.mxu0 0
    %346 = vmatpush2.bf16.msra.mxu0 0
    %347 = vmatprep.subr.bf16.mxu0 0
    %348 = vmatpush2.bf16.msra.mxu0 0
    %349 = vmatprep.subr.bf16.mxu0 0
    %350 = vmatpush2.bf16.msra.mxu0 0
    %351 = vmatprep.mubr.bf16.mxu0 0
    %352 = vmatmul.mubr.bf16.gmra.mxu0 %v314
    %v353 = vpop.f32.mrf.mxu0
    %v354 = vadd.f32 0.0, %v353
    %v355 = vpop.f32.mrf.mxu0
    %v356 = vpop.f32.mrf.mxu0
    %v357 = vadd.f32 0.0, %v356
    %v358 = vpop.f32.mrf.mxu0
    %359 = vmatprep.mubr.bf16.mxu0 0
    %360 = vmatmul.mubr.bf16.gmra.mxu0 %v317
    %v361 = vpop.f32.mrf.mxu0
    %v362 = vadd.f32 0.0, %v361
    %v363 = vpop.f32.mrf.mxu0
    %v364 = vpop.f32.mrf.mxu0
    %v365 = vadd.f32 0.0, %v364
    %v366 = vpop.f32.mrf.mxu0
    %367 = vdwg.mxu0
    %v368 = vpack.c.bf16 %v357, %v354
    %v369 = vpack.c.bf16 %v365, %v362
    %v372 = vunpack.c.l.b16 %v368
    %v373 = vunpack.c.h.b16 %v368
    %v374 = vunpack.c.l.b16 %v369
    %v375 = vunpack.c.h.b16 %v369
    %v376 = vpack.c.b16 %v372, %v372
    %v377 = vpack.c.b16 %v373, %v373
    %v378 = vpack.c.b16 %v374, %v374
    %v379 = vpack.c.b16 %v375, %v375
    %vm384 = vcmask 257024
    %385 = vst.msk [vmem:[#allocation3] sm:$0xf] %vm384, %v376
    %386 = vst.msk [vmem:[#allocation3 + $0x4] sm:$0xf] %vm384, %v377
    %387 = vst.msk [vmem:[#allocation3 + $0x8] sm:$0xf] %vm384, %v378
    %388 = vst.msk [vmem:[#allocation3 + $0xc] sm:$0xf] %vm384, %v379
    %v389 = vld [vmem:[%s10] sm:$0xf]
    %v390 = vld [vmem:[%s10 + $0x4] sm:$0xf]
    %v391 = vld [vmem:[%s10 + $0x8] sm:$0xf]
    %v392 = vld [vmem:[%s10 + $0xc] sm:$0xf]
    %v397 = vunpack.c.l.b16 %v389
    %v398 = vunpack.c.l.b16 %v390
    %v399 = vunpack.c.l.b16 %v391
    %v400 = vunpack.c.l.b16 %v392
    %v401 = vpack.c.b16 %v398, %v397
    %v402 = vpack.c.b16 %v400, %v399
    %405 = vmatprep.subr.bf16.mxu0 0
    %406 = vmatpush1.bf16.msra.mxu0 0
    %407 = vmatprep.subr.bf16.mxu0 0
    %408 = vmatpush1.bf16.msra.mxu0 0
    %409 = vmatprep.subr.bf16.mxu0 0
    %410 = vmatpush1.bf16.msra.mxu0 0
    %411 = vmatprep.subr.bf16.mxu0 0
    %412 = vmatpush1.bf16.msra.mxu0 0
    %413 = vmatprep.subr.bf16.mxu0 0
    %414 = vmatpush1.bf16.msra.mxu0 0
    %415 = vmatprep.subr.bf16.mxu0 0
    %416 = vmatpush1.bf16.msra.mxu0 0
    %417 = vmatprep.subr.bf16.mxu0 0
    %418 = vmatpush1.bf16.msra.mxu0 %v402
    %419 = vmatprep.subr.bf16.mxu0 0
    %420 = vmatpush1.bf16.msra.mxu0 %v401
    %421 = vmatprep.subr.bf16.mxu0 0
    %422 = vmatpush2.bf16.msra.mxu0 0
    %423 = vmatprep.subr.bf16.mxu0 0
    %424 = vmatpush2.bf16.msra.mxu0 0
    %425 = vmatprep.subr.bf16.mxu0 0
    %426 = vmatpush2.bf16.msra.mxu0 0
    %427 = vmatprep.subr.bf16.mxu0 0
    %428 = vmatpush2.bf16.msra.mxu0 0
    %429 = vmatprep.subr.bf16.mxu0 0
    %430 = vmatpush2.bf16.msra.mxu0 0
    %431 = vmatprep.subr.bf16.mxu0 0
    %432 = vmatpush2.bf16.msra.mxu0 0
    %433 = vmatprep.subr.bf16.mxu0 0
    %434 = vmatpush2.bf16.msra.mxu0 0
    %435 = vmatprep.subr.bf16.mxu0 0
    %436 = vmatpush2.bf16.msra.mxu0 0
    %437 = vmatprep.mubr.bf16.mxu0 0
    %438 = vmatmul.mubr.bf16.gmra.mxu0 %v314
    %v439 = vpop.f32.mrf.mxu0
    %v440 = vadd.f32 0.0, %v439
    %v441 = vpop.f32.mrf.mxu0
    %v442 = vpop.f32.mrf.mxu0
    %v443 = vadd.f32 0.0, %v442
    %v444 = vpop.f32.mrf.mxu0
    %445 = vmatprep.mubr.bf16.mxu0 0
    %446 = vmatmul.mubr.bf16.gmra.mxu0 %v317
    %v447 = vpop.f32.mrf.mxu0
    %v448 = vadd.f32 0.0, %v447
    %v449 = vpop.f32.mrf.mxu0
    %v450 = vpop.f32.mrf.mxu0
    %v451 = vadd.f32 0.0, %v450
    %v452 = vpop.f32.mrf.mxu0
    %453 = vdwg.mxu0
    %v454 = vpack.c.bf16 %v443, %v440
    %v455 = vpack.c.bf16 %v451, %v448
    %v458 = vunpack.c.l.b16 %v454
    %v459 = vunpack.c.h.b16 %v454
    %v460 = vunpack.c.l.b16 %v455
    %v461 = vunpack.c.h.b16 %v455
    %v462 = vpack.c.b16 %v458, %v458
    %v463 = vpack.c.b16 %v459, %v459
    %v464 = vpack.c.b16 %v460, %v460
    %v465 = vpack.c.b16 %v461, %v461
    %470 = vst.msk [vmem:[#allocation4] sm:$0xf] %vm384, %v462
    %471 = vst.msk [vmem:[#allocation4 + $0x4] sm:$0xf] %vm384, %v463
    %472 = vst.msk [vmem:[#allocation4 + $0x8] sm:$0xf] %vm384, %v464
    %473 = vst.msk [vmem:[#allocation4 + $0xc] sm:$0xf] %vm384, %v465
    %474 = vst.msk [vmem:[#allocation5] sm:$0xff] %vm141, 0.0
    %475 = vst.msk [vmem:[#allocation5 + $0x8] sm:$0xff] %vm141, 0.0
    %476 = vst.msk [vmem:[#allocation5 + $0x10] sm:$0xff] %vm141, 0.0
    %477 = vst.msk [vmem:[#allocation5 + $0x18] sm:$0xff] %vm141, 0.0
  $region85: #{closed_call.8} parent=0 // pred_fallthru
    _
  %v478 = vlaneseq
  %v479 = vand.u32 %v478, 127
  %v480 = vld [vmem:[%s2] sm:$0xff]
  %v481 = vld [vmem:[%s2 + $0x8] sm:$0xff]
  %v482 = vld [vmem:[%s2 + $0x10] sm:$0xff]
  %v483 = vld [vmem:[%s2 + $0x18] sm:$0xff]
  %v484 = vld [vmem:[%s2 + $0x20] sm:$0xff]
  %v485 = vld [vmem:[%s2 + $0x28] sm:$0xff]
  %v486 = vld [vmem:[%s2 + $0x30] sm:$0xff]
  %v487 = vld [vmem:[%s2 + $0x38] sm:$0xff]
  %v488 = vld [vmem:[%s2 + $0x40] sm:$0xff]
  %v489 = vld [vmem:[%s2 + $0x48] sm:$0xff]
  %v490 = vld [vmem:[%s2 + $0x50] sm:$0xff]
  %v491 = vld [vmem:[%s2 + $0x58] sm:$0xff]
  %v492 = vld [vmem:[%s2 + $0x60] sm:$0xff]
  %v493 = vld [vmem:[%s2 + $0x68] sm:$0xff]
  %494 = vset.pattern.permute.xlu0 0
  %495 = vperm.xlu0 %494, %v480
  %v496 = vpop.permute.xlu0 %495
  %497 = vset.pattern.permute.xlu0 0
  %498 = vperm.xlu0 %497, %v481
  %v499 = vpop.permute.xlu0 %498
  %500 = vset.pattern.permute.xlu0 0
  %501 = vperm.xlu0 %500, %v482
  %v502 = vpop.permute.xlu0 %501
  %503 = vset.pattern.permute.xlu0 0
  %504 = vperm.xlu0 %503, %v483
  %v505 = vpop.permute.xlu0 %504
  %506 = vset.pattern.permute.xlu0 0
  %507 = vperm.xlu0 %506, %v484
  %v508 = vpop.permute.xlu0 %507
  %509 = vset.pattern.permute.xlu0 0
  %510 = vperm.xlu0 %509, %v485
  %v511 = vpop.permute.xlu0 %510
  %512 = vset.pattern.permute.xlu0 0
  %513 = vperm.xlu0 %512, %v486
  %v514 = vpop.permute.xlu0 %513
  %515 = vset.pattern.permute.xlu0 0
  %516 = vperm.xlu0 %515, %v487
  %v517 = vpop.permute.xlu0 %516
  %518 = vset.pattern.permute.xlu0 0
  %519 = vperm.xlu0 %518, %v488
  %v520 = vpop.permute.xlu0 %519
  %521 = vset.pattern.permute.xlu0 0
  %522 = vperm.xlu0 %521, %v489
  %v523 = vpop.permute.xlu0 %522
  %524 = vset.pattern.permute.xlu0 0
  %525 = vperm.xlu0 %524, %v490
  %v526 = vpop.permute.xlu0 %525
  %527 = vset.pattern.permute.xlu0 0
  %528 = vperm.xlu0 %527, %v491
  %v529 = vpop.permute.xlu0 %528
  %530 = vset.pattern.permute.xlu0 0
  %531 = vperm.xlu0 %530, %v492
  %v532 = vpop.permute.xlu0 %531
  %533 = vset.pattern.permute.xlu0 0
  %534 = vperm.xlu0 %533, %v493
  %v535 = vpop.permute.xlu0 %534
  %vm536 = vcmp.eq.s32.totalorder %v479, %v496
  %vm537 = vcmp.eq.s32.totalorder %v479, %v499
  %vm538 = vcmp.eq.s32.totalorder %v479, %v502
  %vm539 = vcmp.eq.s32.totalorder %v479, %v505
  %vm540 = vcmp.eq.s32.totalorder %v479, %v508
  %vm541 = vcmp.eq.s32.totalorder %v479, %v511
  %vm542 = vcmp.eq.s32.totalorder %v479, %v514
  %vm543 = vcmp.eq.s32.totalorder %v479, %v517
  %vm544 = vcmp.eq.s32.totalorder %v479, %v520
  %vm545 = vcmp.eq.s32.totalorder %v479, %v523
  %vm546 = vcmp.eq.s32.totalorder %v479, %v526
  %vm547 = vcmp.eq.s32.totalorder %v479, %v529
  %vm548 = vcmp.eq.s32.totalorder %v479, %v532
  %vm549 = vcmp.eq.s32.totalorder %v479, %v535
  %v550 = vsel %vm536, 1, 0
  %v551 = vsel %vm537, 1, 0
  %v552 = vsel %vm538, 1, 0
  %v553 = vsel %vm539, 1, 0
  %v554 = vsel %vm540, 1, 0
  %v555 = vsel %vm541, 1, 0
  %v556 = vsel %vm542, 1, 0
  %v557 = vsel %vm543, 1, 0
  %v558 = vsel %vm544, 1, 0
  %v559 = vsel %vm545, 1, 0
  %v560 = vsel %vm546, 1, 0
  %v561 = vsel %vm547, 1, 0
  %v562 = vsel %vm548, 1, 0
  %v563 = vsel %vm549, 1, 0
  %v564 = vcvt.s32.f32 %v550
  %v565 = vcvt.s32.f32 %v551
  %v566 = vcvt.s32.f32 %v552
  %v567 = vcvt.s32.f32 %v553
  %v568 = vcvt.s32.f32 %v554
  %v569 = vcvt.s32.f32 %v555
  %v570 = vcvt.s32.f32 %v556
  %v571 = vcvt.s32.f32 %v557
  %v572 = vcvt.s32.f32 %v558
  %v573 = vcvt.s32.f32 %v559
  %v574 = vcvt.s32.f32 %v560
  %v575 = vcvt.s32.f32 %v561
  %v576 = vcvt.s32.f32 %v562
  %v577 = vcvt.s32.f32 %v563
  %v578 = vpack.c.bf16 %v565, %v564
  %v579 = vpack.c.bf16 %v567, %v566
  %v580 = vpack.c.bf16 %v569, %v568
  %v581 = vpack.c.bf16 %v571, %v570
  %v582 = vpack.c.bf16 %v573, %v572
  %v583 = vpack.c.bf16 %v575, %v574
  %v584 = vpack.c.bf16 %v577, %v576
  %v585 = vld [vmem:[%s3] sm:$0xff]
  %v586 = vld [vmem:[%s3 + $0x8] sm:$0xff]
  %v587 = vld [vmem:[%s3 + $0x10] sm:$0xff]
  %v588 = vld [vmem:[%s3 + $0x18] sm:$0xff]
  %v589 = vld [vmem:[%s3 + $0x20] sm:$0xff]
  %v590 = vld [vmem:[%s3 + $0x28] sm:$0xff]
  %v591 = vld [vmem:[%s3 + $0x30] sm:$0xff]
  %v592 = vld [vmem:[%s3 + $0x38] sm:$0xff]
  %v593 = vld [vmem:[%s3 + $0x40] sm:$0xff]
  %v594 = vld [vmem:[%s3 + $0x48] sm:$0xff]
  %v595 = vld [vmem:[%s3 + $0x50] sm:$0xff]
  %v596 = vld [vmem:[%s3 + $0x58] sm:$0xff]
  %v597 = vld [vmem:[%s3 + $0x60] sm:$0xff]
  %v598 = vld [vmem:[%s3 + $0x68] sm:$0xff]
  %599 = vset.pattern.permute.xlu0 0
  %600 = vperm.xlu0 %599, %v585
  %v601 = vpop.permute.xlu0 %600
  %602 = vset.pattern.permute.xlu0 0
  %603 = vperm.xlu0 %602, %v586
  %v604 = vpop.permute.xlu0 %603
  %605 = vset.pattern.permute.xlu0 0
  %606 = vperm.xlu0 %605, %v587
  %v607 = vpop.permute.xlu0 %606
  %608 = vset.pattern.permute.xlu0 0
  %609 = vperm.xlu0 %608, %v588
  %v610 = vpop.permute.xlu0 %609
  %611 = vset.pattern.permute.xlu0 0
  %612 = vperm.xlu0 %611, %v589
  %v613 = vpop.permute.xlu0 %612
  %614 = vset.pattern.permute.xlu0 0
  %615 = vperm.xlu0 %614, %v590
  %v616 = vpop.permute.xlu0 %615
  %617 = vset.pattern.permute.xlu0 0
  %618 = vperm.xlu0 %617, %v591
  %v619 = vpop.permute.xlu0 %618
  %620 = vset.pattern.permute.xlu0 0
  %621 = vperm.xlu0 %620, %v592
  %v622 = vpop.permute.xlu0 %621
  %623 = vset.pattern.permute.xlu0 0
  %624 = vperm.xlu0 %623, %v593
  %v625 = vpop.permute.xlu0 %624
  %626 = vset.pattern.permute.xlu0 0
  %627 = vperm.xlu0 %626, %v594
  %v628 = vpop.permute.xlu0 %627
  %629 = vset.pattern.permute.xlu0 0
  %630 = vperm.xlu0 %629, %v595
  %v631 = vpop.permute.xlu0 %630
  %632 = vset.pattern.permute.xlu0 0
  %633 = vperm.xlu0 %632, %v596
  %v634 = vpop.permute.xlu0 %633
  %635 = vset.pattern.permute.xlu0 0
  %636 = vperm.xlu0 %635, %v597
  %v637 = vpop.permute.xlu0 %636
  %638 = vset.pattern.permute.xlu0 0
  %639 = vperm.xlu0 %638, %v598
  %v640 = vpop.permute.xlu0 %639
  %vm641 = vcmp.eq.s32.totalorder %v479, %v601
  %vm642 = vcmp.eq.s32.totalorder %v479, %v604
  %vm643 = vcmp.eq.s32.totalorder %v479, %v607
  %vm644 = vcmp.eq.s32.totalorder %v479, %v610
  %vm645 = vcmp.eq.s32.totalorder %v479, %v613
  %vm646 = vcmp.eq.s32.totalorder %v479, %v616
  %vm647 = vcmp.eq.s32.totalorder %v479, %v619
  %vm648 = vcmp.eq.s32.totalorder %v479, %v622
  %vm649 = vcmp.eq.s32.totalorder %v479, %v625
  %vm650 = vcmp.eq.s32.totalorder %v479, %v628
  %vm651 = vcmp.eq.s32.totalorder %v479, %v631
  %vm652 = vcmp.eq.s32.totalorder %v479, %v634
  %vm653 = vcmp.eq.s32.totalorder %v479, %v637
  %vm654 = vcmp.eq.s32.totalorder %v479, %v640
  %v655 = vsel %vm641, 1, 0
  %v656 = vsel %vm642, 1, 0
  %v657 = vsel %vm643, 1, 0
  %v658 = vsel %vm644, 1, 0
  %v659 = vsel %vm645, 1, 0
  %v660 = vsel %vm646, 1, 0
  %v661 = vsel %vm647, 1, 0
  %v662 = vsel %vm648, 1, 0
  %v663 = vsel %vm649, 1, 0
  %v664 = vsel %vm650, 1, 0
  %v665 = vsel %vm651, 1, 0
  %v666 = vsel %vm652, 1, 0
  %v667 = vsel %vm653, 1, 0
  %v668 = vsel %vm654, 1, 0
  %v669 = vcvt.s32.f32 %v655
  %v670 = vcvt.s32.f32 %v656
  %v671 = vcvt.s32.f32 %v657
  %v672 = vcvt.s32.f32 %v658
  %v673 = vcvt.s32.f32 %v659
  %v674 = vcvt.s32.f32 %v660
  %v675 = vcvt.s32.f32 %v661
  %v676 = vcvt.s32.f32 %v662
  %v677 = vcvt.s32.f32 %v663
  %v678 = vcvt.s32.f32 %v664
  %v679 = vcvt.s32.f32 %v665
  %v680 = vcvt.s32.f32 %v666
  %v681 = vcvt.s32.f32 %v667
  %v682 = vcvt.s32.f32 %v668
  %v683 = vpack.c.bf16 %v670, %v669
  %v684 = vpack.c.bf16 %v672, %v671
  %v685 = vpack.c.bf16 %v674, %v673
  %v686 = vpack.c.bf16 %v676, %v675
  %v687 = vpack.c.bf16 %v678, %v677
  %v688 = vpack.c.bf16 %v680, %v679
  %v689 = vpack.c.bf16 %v682, %v681
  %v690 = vld [vmem:[#allocation3] sm:$0xf]
  %v691 = vld [vmem:[#allocation3 + $0x4] sm:$0xf]
  %v692 = vld [vmem:[#allocation3 + $0x8] sm:$0xf]
  %v693 = vld [vmem:[#allocation3 + $0xc] sm:$0xf]
  %v694 = vld [vmem:[#allocation4] sm:$0xf]
  %v695 = vld [vmem:[#allocation4 + $0x4] sm:$0xf]
  %v696 = vld [vmem:[#allocation4 + $0x8] sm:$0xf]
  %v697 = vld [vmem:[#allocation4 + $0xc] sm:$0xf]
  %v702 = vunpack.c.l.b16 %v694
  %v703 = vunpack.c.l.b16 %v695
  %v704 = vunpack.c.l.b16 %v696
  %v705 = vunpack.c.l.b16 %v697
  %v706 = vpack.c.b16 %v703, %v702
  %v707 = vpack.c.b16 %v705, %v704
  %vm710 = vcmask 261120
  %v712 = vsel %vm710, %v683, 0
  %v715 = vsel %vm710, %v684, 0
  %v718 = vsel %vm710, %v685, 0
  %v721 = vsel %vm710, %v686, 0
  %v724 = vsel %vm710, %v687, 0
  %v727 = vsel %vm710, %v688, 0
  %v730 = vsel %vm710, %v689, 0
  %732 = vmatprep.subr.bf16.mxu0 0
  %733 = vmatpush1.bf16.msra.mxu0 0
  %734 = vmatprep.subr.bf16.mxu0 0
  %735 = vmatpush1.bf16.msra.mxu0 0
  %736 = vmatprep.subr.bf16.mxu0 0
  %737 = vmatpush1.bf16.msra.mxu0 0
  %738 = vmatprep.subr.bf16.mxu0 0
  %739 = vmatpush1.bf16.msra.mxu0 0
  %740 = vmatprep.subr.bf16.mxu0 0
  %741 = vmatpush1.bf16.msra.mxu0 0
  %742 = vmatprep.subr.bf16.mxu0 0
  %743 = vmatpush1.bf16.msra.mxu0 0
  %744 = vmatprep.subr.bf16.mxu0 0
  %745 = vmatpush1.bf16.msra.mxu0 %v707
  %746 = vmatprep.subr.bf16.mxu0 0
  %747 = vmatpush1.bf16.msra.mxu0 %v706
  %748 = vmatprep.subr.bf16.mxu0 0
  %749 = vmatpush2.bf16.msra.mxu0 0
  %750 = vmatprep.subr.bf16.mxu0 0
  %751 = vmatpush2.bf16.msra.mxu0 0
  %752 = vmatprep.subr.bf16.mxu0 0
  %753 = vmatpush2.bf16.msra.mxu0 0
  %754 = vmatprep.subr.bf16.mxu0 0
  %755 = vmatpush2.bf16.msra.mxu0 0
  %756 = vmatprep.subr.bf16.mxu0 0
  %757 = vmatpush2.bf16.msra.mxu0 0
  %758 = vmatprep.subr.bf16.mxu0 0
  %759 = vmatpush2.bf16.msra.mxu0 0
  %760 = vmatprep.subr.bf16.mxu0 0
  %761 = vmatpush2.bf16.msra.mxu0 0
  %762 = vmatprep.subr.bf16.mxu0 0
  %763 = vmatpush2.bf16.msra.mxu0 0
  %764 = vmatprep.mubr.bf16.mxu0 0
  %765 = vmatmul.mubr.bf16.gmra.mxu0 %v712
  %v766 = vpop.f32.mrf.mxu0
  %v767 = vadd.f32 0.0, %v766
  %v768 = vpop.f32.mrf.mxu0
  %v769 = vpop.f32.mrf.mxu0
  %v770 = vadd.f32 0.0, %v769
  %v771 = vpop.f32.mrf.mxu0
  %772 = vmatprep.mubr.bf16.mxu0 0
  %773 = vmatmul.mubr.bf16.gmra.mxu0 %v715
  %v774 = vpop.f32.mrf.mxu0
  %v775 = vadd.f32 0.0, %v774
  %v776 = vpop.f32.mrf.mxu0
  %v777 = vpop.f32.mrf.mxu0
  %v778 = vadd.f32 0.0, %v777
  %v779 = vpop.f32.mrf.mxu0
  %780 = vmatprep.mubr.bf16.mxu0 0
  %781 = vmatmul.mubr.bf16.gmra.mxu0 %v718
  %v782 = vpop.f32.mrf.mxu0
  %v783 = vadd.f32 0.0, %v782
  %v784 = vpop.f32.mrf.mxu0
  %v785 = vpop.f32.mrf.mxu0
  %v786 = vadd.f32 0.0, %v785
  %v787 = vpop.f32.mrf.mxu0
  %788 = vmatprep.mubr.bf16.mxu0 0
  %789 = vmatmul.mubr.bf16.gmra.mxu0 %v721
  %v790 = vpop.f32.mrf.mxu0
  %v791 = vadd.f32 0.0, %v790
  %v792 = vpop.f32.mrf.mxu0
  %v793 = vpop.f32.mrf.mxu0
  %v794 = vadd.f32 0.0, %v793
  %v795 = vpop.f32.mrf.mxu0
  %796 = vmatprep.mubr.bf16.mxu0 0
  %797 = vmatmul.mubr.bf16.gmra.mxu0 %v724
  %v798 = vpop.f32.mrf.mxu0
  %v799 = vadd.f32 0.0, %v798
  %v800 = vpop.f32.mrf.mxu0
  %v801 = vpop.f32.mrf.mxu0
  %v802 = vadd.f32 0.0, %v801
  %v803 = vpop.f32.mrf.mxu0
  %804 = vmatprep.mubr.bf16.mxu0 0
  %805 = vmatmul.mubr.bf16.gmra.mxu0 %v727
  %v806 = vpop.f32.mrf.mxu0
  %v807 = vadd.f32 0.0, %v806
  %v808 = vpop.f32.mrf.mxu0
  %v809 = vpop.f32.mrf.mxu0
  %v810 = vadd.f32 0.0, %v809
  %v811 = vpop.f32.mrf.mxu0
  %812 = vmatprep.mubr.bf16.mxu0 0
  %813 = vmatmul.mubr.bf16.gmra.mxu0 %v730
  %v814 = vpop.f32.mrf.mxu0
  %v815 = vadd.f32 0.0, %v814
  %v816 = vpop.f32.mrf.mxu0
  %v817 = vpop.f32.mrf.mxu0
  %v818 = vadd.f32 0.0, %v817
  %v819 = vpop.f32.mrf.mxu0
  %820 = vdwg.mxu0
  %v825 = vunpack.c.l.b16 %v690
  %v826 = vunpack.c.l.b16 %v691
  %v827 = vunpack.c.l.b16 %v692
  %v828 = vunpack.c.l.b16 %v693
  %v829 = vpack.c.b16 %v826, %v825
  %v830 = vpack.c.b16 %v828, %v827
  %v834 = vsel %vm710, %v578, 0
  %v837 = vsel %vm710, %v579, 0
  %v840 = vsel %vm710, %v580, 0
  %v843 = vsel %vm710, %v581, 0
  %v846 = vsel %vm710, %v582, 0
  %v849 = vsel %vm710, %v583, 0
  %v852 = vsel %vm710, %v584, 0
  %854 = vmatprep.subr.bf16.mxu0 0
  %855 = vmatpush1.bf16.msra.mxu0 0
  %856 = vmatprep.subr.bf16.mxu0 0
  %857 = vmatpush1.bf16.msra.mxu0 0
  %858 = vmatprep.subr.bf16.mxu0 0
  %859 = vmatpush1.bf16.msra.mxu0 0
  %860 = vmatprep.subr.bf16.mxu0 0
  %861 = vmatpush1.bf16.msra.mxu0 0
  %862 = vmatprep.subr.bf16.mxu0 0
  %863 = vmatpush1.bf16.msra.mxu0 0
  %864 = vmatprep.subr.bf16.mxu0 0
  %865 = vmatpush1.bf16.msra.mxu0 0
  %866 = vmatprep.subr.bf16.mxu0 0
  %867 = vmatpush1.bf16.msra.mxu0 %v830
  %868 = vmatprep.subr.bf16.mxu0 0
  %869 = vmatpush1.bf16.msra.mxu0 %v829
  %870 = vmatprep.subr.bf16.mxu0 0
  %871 = vmatpush2.bf16.msra.mxu0 0
  %872 = vmatprep.subr.bf16.mxu0 0
  %873 = vmatpush2.bf16.msra.mxu0 0
  %874 = vmatprep.subr.bf16.mxu0 0
  %875 = vmatpush2.bf16.msra.mxu0 0
  %876 = vmatprep.subr.bf16.mxu0 0
  %877 = vmatpush2.bf16.msra.mxu0 0
  %878 = vmatprep.subr.bf16.mxu0 0
  %879 = vmatpush2.bf16.msra.mxu0 0
  %880 = vmatprep.subr.bf16.mxu0 0
  %881 = vmatpush2.bf16.msra.mxu0 0
  %882 = vmatprep.subr.bf16.mxu0 0
  %883 = vmatpush2.bf16.msra.mxu0 0
  %884 = vmatprep.subr.bf16.mxu0 0
  %885 = vmatpush2.bf16.msra.mxu0 0
  %886 = vmatprep.mubr.bf16.mxu0 0
  %887 = vmatmul.mubr.bf16.gmra.mxu0 %v834
  %v888 = vpop.f32.mrf.mxu0
  %v889 = vadd.f32 %v767, %v888
  %v890 = vpop.f32.mrf.mxu0
  %v891 = vpop.f32.mrf.mxu0
  %v892 = vadd.f32 %v770, %v891
  %v893 = vpop.f32.mrf.mxu0
  %894 = vmatprep.mubr.bf16.mxu0 0
  %895 = vmatmul.mubr.bf16.gmra.mxu0 %v837
  %v896 = vpop.f32.mrf.mxu0
  %v897 = vadd.f32 %v775, %v896
  %v898 = vpop.f32.mrf.mxu0
  %v899 = vpop.f32.mrf.mxu0
  %v900 = vadd.f32 %v778, %v899
  %v901 = vpop.f32.mrf.mxu0
  %902 = vmatprep.mubr.bf16.mxu0 0
  %903 = vmatmul.mubr.bf16.gmra.mxu0 %v840
  %v904 = vpop.f32.mrf.mxu0
  %v905 = vadd.f32 %v783, %v904
  %v906 = vpop.f32.mrf.mxu0
  %v907 = vpop.f32.mrf.mxu0
  %v908 = vadd.f32 %v786, %v907
  %v909 = vpop.f32.mrf.mxu0
  %910 = vmatprep.mubr.bf16.mxu0 0
  %911 = vmatmul.mubr.bf16.gmra.mxu0 %v843
  %v912 = vpop.f32.mrf.mxu0
  %v913 = vadd.f32 %v791, %v912
  %v914 = vpop.f32.mrf.mxu0
  %v915 = vpop.f32.mrf.mxu0
  %v916 = vadd.f32 %v794, %v915
  %v917 = vpop.f32.mrf.mxu0
  %918 = vmatprep.mubr.bf16.mxu0 0
  %919 = vmatmul.mubr.bf16.gmra.mxu0 %v846
  %v920 = vpop.f32.mrf.mxu0
  %v921 = vadd.f32 %v799, %v920
  %v922 = vpop.f32.mrf.mxu0
  %v923 = vpop.f32.mrf.mxu0
  %v924 = vadd.f32 %v802, %v923
  %v925 = vpop.f32.mrf.mxu0
  %926 = vmatprep.mubr.bf16.mxu0 0
  %927 = vmatmul.mubr.bf16.gmra.mxu0 %v849
  %v928 = vpop.f32.mrf.mxu0
  %v929 = vadd.f32 %v807, %v928
  %v930 = vpop.f32.mrf.mxu0
  %v931 = vpop.f32.mrf.mxu0
  %v932 = vadd.f32 %v810, %v931
  %v933 = vpop.f32.mrf.mxu0
  %934 = vmatprep.mubr.bf16.mxu0 0
  %935 = vmatmul.mubr.bf16.gmra.mxu0 %v852
  %v936 = vpop.f32.mrf.mxu0
  %v937 = vadd.f32 %v815, %v936
  %v938 = vpop.f32.mrf.mxu0
  %v939 = vpop.f32.mrf.mxu0
  %v940 = vadd.f32 %v818, %v939
  %v941 = vpop.f32.mrf.mxu0
  %942 = vdwg.mxu0
  %v943 = vld [vmem:[%s11] sm:$0x1]
  %v945 = vlaneseq
  %v946 = vshrl.u32 %v945, 7
  %v947 = vsub.s32 0, %v946
  %v948 = vrot.slane %v943, %v947
  %v950 = vadd.f32 %v889, %v948
  %v951 = vadd.f32 %v892, %v948
  %v952 = vadd.f32 %v897, %v948
  %v953 = vadd.f32 %v900, %v948
  %v954 = vadd.f32 %v905, %v948
  %v955 = vadd.f32 %v908, %v948
  %v956 = vadd.f32 %v913, %v948
  %v957 = vadd.f32 %v916, %v948
  %v958 = vadd.f32 %v921, %v948
  %v959 = vadd.f32 %v924, %v948
  %v960 = vadd.f32 %v929, %v948
  %v961 = vadd.f32 %v932, %v948
  %v962 = vadd.f32 %v937, %v948
  %v963 = vadd.f32 %v940, %v948
  %v964 = vmax.f32 %v950, 0.0
  %v965 = vmax.f32 %v951, 0.0
  %v966 = vmax.f32 %v952, 0.0
  %v967 = vmax.f32 %v953, 0.0
  %v968 = vmax.f32 %v954, 0.0
  %v969 = vmax.f32 %v955, 0.0
  %v970 = vmax.f32 %v956, 0.0
  %v971 = vmax.f32 %v957, 0.0
  %v972 = vmax.f32 %v958, 0.0
  %v973 = vmax.f32 %v959, 0.0
  %v974 = vmax.f32 %v960, 0.0
  %v975 = vmax.f32 %v961, 0.0
  %v976 = vmax.f32 %v962, 0.0
  %v977 = vmax.f32 %v963, 0.0
  %v978 = vpack.c.bf16 %v965, %v964
  %v979 = vpack.c.bf16 %v967, %v966
  %v980 = vpack.c.bf16 %v969, %v968
  %v981 = vpack.c.bf16 %v971, %v970
  %v982 = vpack.c.bf16 %v973, %v972
  %v983 = vpack.c.bf16 %v975, %v974
  %v984 = vpack.c.bf16 %v977, %v976
  %v985 = vld [vmem:[%s12] sm:$0xf]
  %v986 = vld [vmem:[%s12 + $0x4] sm:$0xf]
  %v987 = vld [vmem:[%s12 + $0x8] sm:$0xf]
  %v988 = vld [vmem:[%s12 + $0xc] sm:$0xf]
  %v989 = vld [vmem:[%s13] sm:$0x1]
  %v991 = vlaneseq
  %v992 = vshrl.u32 %v991, 7
  %v993 = vsub.s32 0, %v992
  %v994 = vrot.slane %v989, %v993
  %v1000 = vunpack.c.l.b16 %v985
  %v1001 = vunpack.c.l.b16 %v986
  %v1002 = vunpack.c.l.b16 %v987
  %v1003 = vunpack.c.l.b16 %v988
  %v1004 = vpack.c.b16 %v1001, %v1000
  %v1005 = vpack.c.b16 %v1003, %v1002
  %v1009 = vsel %vm710, %v978, 0
  %v1012 = vsel %vm710, %v979, 0
  %v1015 = vsel %vm710, %v980, 0
  %v1018 = vsel %vm710, %v981, 0
  %v1021 = vsel %vm710, %v982, 0
  %v1024 = vsel %vm710, %v983, 0
  %v1027 = vsel %vm710, %v984, 0
  %1029 = vmatprep.subr.bf16.mxu0 0
  %1030 = vmatpush1.bf16.msra.mxu0 0
  %1031 = vmatprep.subr.bf16.mxu0 0
  %1032 = vmatpush1.bf16.msra.mxu0 0
  %1033 = vmatprep.subr.bf16.mxu0 0
  %1034 = vmatpush1.bf16.msra.mxu0 0
  %1035 = vmatprep.subr.bf16.mxu0 0
  %1036 = vmatpush1.bf16.msra.mxu0 0
  %1037 = vmatprep.subr.bf16.mxu0 0
  %1038 = vmatpush1.bf16.msra.mxu0 0
  %1039 = vmatprep.subr.bf16.mxu0 0
  %1040 = vmatpush1.bf16.msra.mxu0 0
  %1041 = vmatprep.subr.bf16.mxu0 0
  %1042 = vmatpush1.bf16.msra.mxu0 %v1005
  %1043 = vmatprep.subr.bf16.mxu0 0
  %1044 = vmatpush1.bf16.msra.mxu0 %v1004
  %1045 = vmatprep.subr.bf16.mxu0 0
  %1046 = vmatpush2.bf16.msra.mxu0 0
  %1047 = vmatprep.subr.bf16.mxu0 0
  %1048 = vmatpush2.bf16.msra.mxu0 0
  %1049 = vmatprep.subr.bf16.mxu0 0
  %1050 = vmatpush2.bf16.msra.mxu0 0
  %1051 = vmatprep.subr.bf16.mxu0 0
  %1052 = vmatpush2.bf16.msra.mxu0 0
  %1053 = vmatprep.subr.bf16.mxu0 0
  %1054 = vmatpush2.bf16.msra.mxu0 0
  %1055 = vmatprep.subr.bf16.mxu0 0
  %1056 = vmatpush2.bf16.msra.mxu0 0
  %1057 = vmatprep.subr.bf16.mxu0 0
  %1058 = vmatpush2.bf16.msra.mxu0 0
  %1059 = vmatprep.subr.bf16.mxu0 0
  %1060 = vmatpush2.bf16.msra.mxu0 0
  %1061 = vmatprep.mubr.bf16.mxu0 0
  %1062 = vmatmul.mubr.bf16.gmra.mxu0 %v1009
  %v1063 = vpop.f32.mrf.mxu0
  %v1064 = vadd.f32 %v994, %v1063
  %v1065 = vpop.f32.mrf.mxu0
  %v1066 = vpop.f32.mrf.mxu0
  %v1067 = vadd.f32 %v994, %v1066
  %v1068 = vpop.f32.mrf.mxu0
  %1069 = vmatprep.mubr.bf16.mxu0 0
  %1070 = vmatmul.mubr.bf16.gmra.mxu0 %v1012
  %v1071 = vpop.f32.mrf.mxu0
  %v1072 = vadd.f32 %v994, %v1071
  %v1073 = vpop.f32.mrf.mxu0
  %v1074 = vpop.f32.mrf.mxu0
  %v1075 = vadd.f32 %v994, %v1074
  %v1076 = vpop.f32.mrf.mxu0
  %1077 = vmatprep.mubr.bf16.mxu0 0
  %1078 = vmatmul.mubr.bf16.gmra.mxu0 %v1015
  %v1079 = vpop.f32.mrf.mxu0
  %v1080 = vadd.f32 %v994, %v1079
  %v1081 = vpop.f32.mrf.mxu0
  %v1082 = vpop.f32.mrf.mxu0
  %v1083 = vadd.f32 %v994, %v1082
  %v1084 = vpop.f32.mrf.mxu0
  %1085 = vmatprep.mubr.bf16.mxu0 0
  %1086 = vmatmul.mubr.bf16.gmra.mxu0 %v1018
  %v1087 = vpop.f32.mrf.mxu0
  %v1088 = vadd.f32 %v994, %v1087
  %v1089 = vpop.f32.mrf.mxu0
  %v1090 = vpop.f32.mrf.mxu0
  %v1091 = vadd.f32 %v994, %v1090
  %v1092 = vpop.f32.mrf.mxu0
  %1093 = vmatprep.mubr.bf16.mxu0 0
  %1094 = vmatmul.mubr.bf16.gmra.mxu0 %v1021
  %v1095 = vpop.f32.mrf.mxu0
  %v1096 = vadd.f32 %v994, %v1095
  %v1097 = vpop.f32.mrf.mxu0
  %v1098 = vpop.f32.mrf.mxu0
  %v1099 = vadd.f32 %v994, %v1098
  %v1100 = vpop.f32.mrf.mxu0
  %1101 = vmatprep.mubr.bf16.mxu0 0
  %1102 = vmatmul.mubr.bf16.gmra.mxu0 %v1024
  %v1103 = vpop.f32.mrf.mxu0
  %v1104 = vadd.f32 %v994, %v1103
  %v1105 = vpop.f32.mrf.mxu0
  %v1106 = vpop.f32.mrf.mxu0
  %v1107 = vadd.f32 %v994, %v1106
  %v1108 = vpop.f32.mrf.mxu0
  %1109 = vmatprep.mubr.bf16.mxu0 0
  %1110 = vmatmul.mubr.bf16.gmra.mxu0 %v1027
  %v1111 = vpop.f32.mrf.mxu0
  %v1112 = vadd.f32 %v994, %v1111
  %v1113 = vpop.f32.mrf.mxu0
  %v1114 = vpop.f32.mrf.mxu0
  %v1115 = vadd.f32 %v994, %v1114
  %v1116 = vpop.f32.mrf.mxu0
  %1117 = vdwg.mxu0
  %v1118 = vld [vmem:[#allocation5] sm:$0xff]
  %v1119 = vld [vmem:[#allocation5 + $0x8] sm:$0xff]
  %v1120 = vld [vmem:[#allocation5 + $0x10] sm:$0xff]
  %v1121 = vld [vmem:[#allocation5 + $0x18] sm:$0xff]
  %v1122 = vpack.c.bf16 %v1067, %v1064
  %v1123 = vpack.c.bf16 %v1075, %v1072
  %v1124 = vpack.c.bf16 %v1083, %v1080
  %v1125 = vpack.c.bf16 %v1091, %v1088
  %v1126 = vpack.c.bf16 %v1099, %v1096
  %v1127 = vpack.c.bf16 %v1107, %v1104
  %v1128 = vpack.c.bf16 %v1115, %v1112
  %1129 = vxpose.xlu0.c.b16.start [1/8] %v683, 128
  %1130 = vxpose.xlu0.c.b16.cont [2/8] %v684, 128
  %1131 = vxpose.xlu0.c.b16.cont [3/8] %v685, 128
  %1132 = vxpose.xlu0.c.b16.cont [4/8] %v686, 128
  %1133 = vxpose.xlu0.c.b16.cont [5/8] %v687, 128
  %1134 = vxpose.xlu0.c.b16.cont [6/8] %v688, 128
  %1135 = vxpose.xlu0.c.b16.cont [7/8] %v689, 128
  %1136 = vxpose.xlu0.c.b16.end [8/8] 0, 128
  %v1137 = vpop.trf.xlu0
  %v1138 = vpop.trf.xlu0
  %v1139 = vpop.trf.xlu0
  %v1140 = vpop.trf.xlu0
  %v1141 = vpop.trf.xlu0
  %v1142 = vpop.trf.xlu0
  %v1143 = vpop.trf.xlu0
  %v1144 = vpop.trf.xlu0
  %vm1145 = vcmask 916480
  %v1147 = vsel %vm1145, %v1137, 0
  %v1150 = vsel %vm1145, %v1138, 0
  %1152 = vmatprep.subr.bf16.mxu0 0
  %1153 = vmatpush1.bf16.msra.mxu0 0
  %1154 = vmatprep.subr.bf16.mxu0 0
  %1155 = vmatpush1.bf16.msra.mxu0 %v1128
  %1156 = vmatprep.subr.bf16.mxu0 0
  %1157 = vmatpush1.bf16.msra.mxu0 %v1127
  %1158 = vmatprep.subr.bf16.mxu0 0
  %1159 = vmatpush1.bf16.msra.mxu0 %v1126
  %1160 = vmatprep.subr.bf16.mxu0 0
  %1161 = vmatpush1.bf16.msra.mxu0 %v1125
  %1162 = vmatprep.subr.bf16.mxu0 0
  %1163 = vmatpush1.bf16.msra.mxu0 %v1124
  %1164 = vmatprep.subr.bf16.mxu0 0
  %1165 = vmatpush1.bf16.msra.mxu0 %v1123
  %1166 = vmatprep.subr.bf16.mxu0 0
  %1167 = vmatpush1.bf16.msra.mxu0 %v1122
  %1168 = vmatprep.subr.bf16.mxu0 0
  %1169 = vmatpush2.bf16.msra.mxu0 0
  %1170 = vmatprep.subr.bf16.mxu0 0
  %1171 = vmatpush2.bf16.msra.mxu0 0
  %1172 = vmatprep.subr.bf16.mxu0 0
  %1173 = vmatpush2.bf16.msra.mxu0 0
  %1174 = vmatprep.subr.bf16.mxu0 0
  %1175 = vmatpush2.bf16.msra.mxu0 0
  %1176 = vmatprep.subr.bf16.mxu0 0
  %1177 = vmatpush2.bf16.msra.mxu0 0
  %1178 = vmatprep.subr.bf16.mxu0 0
  %1179 = vmatpush2.bf16.msra.mxu0 0
  %1180 = vmatprep.subr.bf16.mxu0 0
  %1181 = vmatpush2.bf16.msra.mxu0 0
  %1182 = vmatprep.subr.bf16.mxu0 0
  %1183 = vmatpush2.bf16.msra.mxu0 0
  %1184 = vmatprep.mubr.bf16.mxu0 0
  %1185 = vmatmul.mubr.bf16.gmra.mxu0 %v1147
  %v1186 = vpop.f32.mrf.mxu0
  %v1187 = vadd.f32 0.0, %v1186
  %v1188 = vpop.f32.mrf.mxu0
  %v1189 = vpop.f32.mrf.mxu0
  %v1190 = vadd.f32 0.0, %v1189
  %v1191 = vpop.f32.mrf.mxu0
  %1192 = vmatprep.mubr.bf16.mxu0 0
  %1193 = vmatmul.mubr.bf16.gmra.mxu0 %v1150
  %v1194 = vpop.f32.mrf.mxu0
  %v1195 = vadd.f32 0.0, %v1194
  %v1196 = vpop.f32.mrf.mxu0
  %v1197 = vpop.f32.mrf.mxu0
  %v1198 = vadd.f32 0.0, %v1197
  %v1199 = vpop.f32.mrf.mxu0
  %1200 = vdwg.mxu0
  %v1201 = vadd.f32 %v1118, %v1187
  %v1202 = vadd.f32 %v1119, %v1190
  %v1203 = vadd.f32 %v1120, %v1195
  %v1204 = vadd.f32 %v1121, %v1198
  %1205 = vst.msk [vmem:[#allocation5] sm:$0xff] %vm710, %v1201
  %1206 = vst.msk [vmem:[#allocation5 + $0x8] sm:$0xff] %vm710, %v1202
  %1207 = vst.msk [vmem:[#allocation5 + $0x10] sm:$0xff] %vm710, %v1203
  %1208 = vst.msk [vmem:[#allocation5 + $0x18] sm:$0xff] %vm710, %v1204
  // Predicated region
  $region86: #{closed_call.8} parent=0 // pred_check
    %p1209 = pneg %p66
  $region87: #{closed_call.8} parent=0 // pred_check_branch
    %1211 = sbr.rel (%p1209) target = $region89
  $region88: #{closed_call.8} parent=0 // pred_region
    %v1212 = vld [vmem:[#allocation5] sm:$0xff]
    %v1213 = vld [vmem:[#allocation5 + $0x8] sm:$0xff]
    %v1214 = vld [vmem:[#allocation5 + $0x10] sm:$0xff]
    %v1215 = vld [vmem:[#allocation5 + $0x18] sm:$0xff]
    %v1216 = vpack.c.bf16 %v1213, %v1212
    %v1217 = vpack.c.bf16 %v1215, %v1214
    %v1218 = vld [vmem:[%s14] sm:$0xf]
    %v1219 = vld [vmem:[%s14 + $0x4] sm:$0xf]
    %v1220 = vld [vmem:[%s14 + $0x8] sm:$0xf]
    %v1221 = vld [vmem:[%s14 + $0xc] sm:$0xf]
    %v1222 = vld [vmem:[%s15] sm:$0x1]
    %v1224 = vlaneseq
    %v1225 = vshrl.u32 %v1224, 7
    %v1226 = vsub.s32 0, %v1225
    %v1227 = vrot.slane %v1222, %v1226
    %v1233 = vunpack.c.l.b16 %v1218
    %v1234 = vunpack.c.l.b16 %v1219
    %v1235 = vunpack.c.l.b16 %v1220
    %v1236 = vunpack.c.l.b16 %v1221
    %v1237 = vpack.c.b16 %v1234, %v1233
    %v1238 = vpack.c.b16 %v1236, %v1235
    %v1242 = vsel %vm710, %v1216, 0
    %v1245 = vsel %vm710, %v1217, 0
    %1247 = vmatprep.subr.bf16.mxu0 0
    %1248 = vmatpush1.bf16.msra.mxu0 0
    %1249 = vmatprep.subr.bf16.mxu0 0
    %1250 = vmatpush1.bf16.msra.mxu0 0
    %1251 = vmatprep.subr.bf16.mxu0 0
    %1252 = vmatpush1.bf16.msra.mxu0 0
    %1253 = vmatprep.subr.bf16.mxu0 0
    %1254 = vmatpush1.bf16.msra.mxu0 0
    %1255 = vmatprep.subr.bf16.mxu0 0
    %1256 = vmatpush1.bf16.msra.mxu0 0
    %1257 = vmatprep.subr.bf16.mxu0 0
    %1258 = vmatpush1.bf16.msra.mxu0 0
    %1259 = vmatprep.subr.bf16.mxu0 0
    %1260 = vmatpush1.bf16.msra.mxu0 %v1238
    %1261 = vmatprep.subr.bf16.mxu0 0
    %1262 = vmatpush1.bf16.msra.mxu0 %v1237
    %1263 = vmatprep.subr.bf16.mxu0 0
    %1264 = vmatpush2.bf16.msra.mxu0 0
    %1265 = vmatprep.subr.bf16.mxu0 0
    %1266 = vmatpush2.bf16.msra.mxu0 0
    %1267 = vmatprep.subr.bf16.mxu0 0
    %1268 = vmatpush2.bf16.msra.mxu0 0
    %1269 = vmatprep.subr.bf16.mxu0 0
    %1270 = vmatpush2.bf16.msra.mxu0 0
    %1271 = vmatprep.subr.bf16.mxu0 0
    %1272 = vmatpush2.bf16.msra.mxu0 0
    %1273 = vmatprep.subr.bf16.mxu0 0
    %1274 = vmatpush2.bf16.msra.mxu0 0
    %1275 = vmatprep.subr.bf16.mxu0 0
    %1276 = vmatpush2.bf16.msra.mxu0 0
    %1277 = vmatprep.subr.bf16.mxu0 0
    %1278 = vmatpush2.bf16.msra.mxu0 0
    %1279 = vmatprep.mubr.bf16.mxu0 0
    %1280 = vmatmul.mubr.bf16.gmra.mxu0 %v1242
    %v1281 = vpop.f32.mrf.mxu0
    %v1282 = vadd.f32 %v1227, %v1281
    %v1283 = vpop.f32.mrf.mxu0
    %v1284 = vpop.f32.mrf.mxu0
    %v1285 = vadd.f32 %v1227, %v1284
    %v1286 = vpop.f32.mrf.mxu0
    %1287 = vmatprep.mubr.bf16.mxu0 0
    %1288 = vmatmul.mubr.bf16.gmra.mxu0 %v1245
    %v1289 = vpop.f32.mrf.mxu0
    %v1290 = vadd.f32 %v1227, %v1289
    %v1291 = vpop.f32.mrf.mxu0
    %v1292 = vpop.f32.mrf.mxu0
    %v1293 = vadd.f32 %v1227, %v1292
    %v1294 = vpop.f32.mrf.mxu0
    %1295 = vdwg.mxu0
    %v1296 = vmax.f32 %v1282, 0.0
    %v1297 = vmax.f32 %v1285, 0.0
    %v1298 = vmax.f32 %v1290, 0.0
    %v1299 = vmax.f32 %v1293, 0.0
    %v1300 = vld [vmem:[#allocation2] sm:$0xff]
    %v1301 = vld [vmem:[#allocation2 + $0x8] sm:$0xff]
    %v1302 = vld [vmem:[#allocation2 + $0x10] sm:$0xff]
    %v1303 = vld [vmem:[#allocation2 + $0x18] sm:$0xff]
    %v1304 = vpack.c.bf16 %v1297, %v1296
    %v1305 = vpack.c.bf16 %v1299, %v1298
    %v1306 = vld [vmem:[%s16] sm:$0xf]
    %v1307 = vld [vmem:[%s16 + $0x4] sm:$0xf]
    %v1308 = vld [vmem:[%s16 + $0x8] sm:$0xf]
    %v1309 = vld [vmem:[%s16 + $0xc] sm:$0xf]
    %v1314 = vunpack.c.l.b16 %v1306
    %v1315 = vunpack.c.l.b16 %v1307
    %v1316 = vunpack.c.l.b16 %v1308
    %v1317 = vunpack.c.l.b16 %v1309
    %v1318 = vpack.c.b16 %v1315, %v1314
    %v1319 = vpack.c.b16 %v1317, %v1316
    %v1323 = vsel %vm710, %v1304, 0
    %v1326 = vsel %vm710, %v1305, 0
    %1328 = vmatprep.subr.bf16.mxu0 0
    %1329 = vmatpush1.bf16.msra.mxu0 0
    %1330 = vmatprep.subr.bf16.mxu0 0
    %1331 = vmatpush1.bf16.msra.mxu0 0
    %1332 = vmatprep.subr.bf16.mxu0 0
    %1333 = vmatpush1.bf16.msra.mxu0 0
    %1334 = vmatprep.subr.bf16.mxu0 0
    %1335 = vmatpush1.bf16.msra.mxu0 0
    %1336 = vmatprep.subr.bf16.mxu0 0
    %1337 = vmatpush1.bf16.msra.mxu0 0
    %1338 = vmatprep.subr.bf16.mxu0 0
    %1339 = vmatpush1.bf16.msra.mxu0 0
    %1340 = vmatprep.subr.bf16.mxu0 0
    %1341 = vmatpush1.bf16.msra.mxu0 %v1319
    %1342 = vmatprep.subr.bf16.mxu0 0
    %1343 = vmatpush1.bf16.msra.mxu0 %v1318
    %1344 = vmatprep.subr.bf16.mxu0 0
    %1345 = vmatpush2.bf16.msra.mxu0 0
    %1346 = vmatprep.subr.bf16.mxu0 0
    %1347 = vmatpush2.bf16.msra.mxu0 0
    %1348 = vmatprep.subr.bf16.mxu0 0
    %1349 = vmatpush2.bf16.msra.mxu0 0
    %1350 = vmatprep.subr.bf16.mxu0 0
    %1351 = vmatpush2.bf16.msra.mxu0 0
    %1352 = vmatprep.subr.bf16.mxu0 0
    %1353 = vmatpush2.bf16.msra.mxu0 0
    %1354 = vmatprep.subr.bf16.mxu0 0
    %1355 = vmatpush2.bf16.msra.mxu0 0
    %1356 = vmatprep.subr.bf16.mxu0 0
    %1357 = vmatpush2.bf16.msra.mxu0 0
    %1358 = vmatprep.subr.bf16.mxu0 0
    %1359 = vmatpush2.bf16.msra.mxu0 0
    %1360 = vmatprep.mubr.bf16.mxu0 0
    %1361 = vmatmul.mubr.bf16.gmra.mxu0 %v1323
    %v1362 = vpop.f32.mrf.mxu0
    %v1363 = vadd.f32 0.0, %v1362
    %v1364 = vpop.f32.mrf.mxu0
    %v1365 = vpop.f32.mrf.mxu0
    %v1366 = vadd.f32 0.0, %v1365
    %v1367 = vpop.f32.mrf.mxu0
    %1368 = vmatprep.mubr.bf16.mxu0 0
    %1369 = vmatmul.mubr.bf16.gmra.mxu0 %v1326
    %v1370 = vpop.f32.mrf.mxu0
    %v1371 = vadd.f32 0.0, %v1370
    %v1372 = vpop.f32.mrf.mxu0
    %v1373 = vpop.f32.mrf.mxu0
    %v1374 = vadd.f32 0.0, %v1373
    %v1375 = vpop.f32.mrf.mxu0
    %1376 = vdwg.mxu0
    %v1377 = vadd.f32 %v1300, %v1363
    %v1378 = vadd.f32 %v1301, %v1366
    %v1379 = vadd.f32 %v1302, %v1371
    %v1380 = vadd.f32 %v1303, %v1374
    %v1381 = vld [vmem:[%s17] sm:$0x1]
    %v1383 = vlaneseq
    %v1384 = vshrl.u32 %v1383, 7
    %v1385 = vsub.s32 0, %v1384
    %v1386 = vrot.slane %v1381, %v1385
    %v1388 = vadd.f32 %v1377, %v1386
    %v1389 = vadd.f32 %v1378, %v1386
    %v1390 = vadd.f32 %v1379, %v1386
    %v1391 = vadd.f32 %v1380, %v1386
    %v1392 = vpack.c.bf16 %v1389, %v1388
    %v1393 = vpack.c.bf16 %v1391, %v1390
    %v1394 = vld [vmem:[%s18] sm:$0xf]
    %v1395 = vld [vmem:[%s18 + $0x4] sm:$0xf]
    %v1396 = vld [vmem:[%s18 + $0x8] sm:$0xf]
    %v1397 = vld [vmem:[%s18 + $0xc] sm:$0xf]
    %v1398 = vld [vmem:[%s19] sm:$0x1]
    %v1400 = vlaneseq
    %v1401 = vshrl.u32 %v1400, 7
    %v1402 = vsub.s32 0, %v1401
    %v1403 = vrot.slane %v1398, %v1402
    %v1409 = vunpack.c.l.b16 %v1394
    %v1410 = vunpack.c.l.b16 %v1395
    %v1411 = vunpack.c.l.b16 %v1396
    %v1412 = vunpack.c.l.b16 %v1397
    %v1413 = vpack.c.b16 %v1410, %v1409
    %v1414 = vpack.c.b16 %v1412, %v1411
    %v1418 = vsel %vm710, %v1392, 0
    %v1421 = vsel %vm710, %v1393, 0
    %1423 = vmatprep.subr.bf16.mxu0 0
    %1424 = vmatpush1.bf16.msra.mxu0 0
    %1425 = vmatprep.subr.bf16.mxu0 0
    %1426 = vmatpush1.bf16.msra.mxu0 0
    %1427 = vmatprep.subr.bf16.mxu0 0
    %1428 = vmatpush1.bf16.msra.mxu0 0
    %1429 = vmatprep.subr.bf16.mxu0 0
    %1430 = vmatpush1.bf16.msra.mxu0 0
    %1431 = vmatprep.subr.bf16.mxu0 0
    %1432 = vmatpush1.bf16.msra.mxu0 0
    %1433 = vmatprep.subr.bf16.mxu0 0
    %1434 = vmatpush1.bf16.msra.mxu0 0
    %1435 = vmatprep.subr.bf16.mxu0 0
    %1436 = vmatpush1.bf16.msra.mxu0 %v1414
    %1437 = vmatprep.subr.bf16.mxu0 0
    %1438 = vmatpush1.bf16.msra.mxu0 %v1413
    %1439 = vmatprep.subr.bf16.mxu0 0
    %1440 = vmatpush2.bf16.msra.mxu0 0
    %1441 = vmatprep.subr.bf16.mxu0 0
    %1442 = vmatpush2.bf16.msra.mxu0 0
    %1443 = vmatprep.subr.bf16.mxu0 0
    %1444 = vmatpush2.bf16.msra.mxu0 0
    %1445 = vmatprep.subr.bf16.mxu0 0
    %1446 = vmatpush2.bf16.msra.mxu0 0
    %1447 = vmatprep.subr.bf16.mxu0 0
    %1448 = vmatpush2.bf16.msra.mxu0 0
    %1449 = vmatprep.subr.bf16.mxu0 0
    %1450 = vmatpush2.bf16.msra.mxu0 0
    %1451 = vmatprep.subr.bf16.mxu0 0
    %1452 = vmatpush2.bf16.msra.mxu0 0
    %1453 = vmatprep.subr.bf16.mxu0 0
    %1454 = vmatpush2.bf16.msra.mxu0 0
    %1455 = vmatprep.mubr.bf16.mxu0 0
    %1456 = vmatmul.mubr.bf16.gmra.mxu0 %v1418
    %v1457 = vpop.f32.mrf.mxu0
    %v1458 = vadd.f32 %v1403, %v1457
    %v1459 = vpop.f32.mrf.mxu0
    %v1460 = vpop.f32.mrf.mxu0
    %v1461 = vadd.f32 %v1403, %v1460
    %v1462 = vpop.f32.mrf.mxu0
    %1463 = vmatprep.mubr.bf16.mxu0 0
    %1464 = vmatmul.mubr.bf16.gmra.mxu0 %v1421
    %v1465 = vpop.f32.mrf.mxu0
    %v1466 = vadd.f32 %v1403, %v1465
    %v1467 = vpop.f32.mrf.mxu0
    %v1468 = vpop.f32.mrf.mxu0
    %v1469 = vadd.f32 %v1403, %v1468
    %v1470 = vpop.f32.mrf.mxu0
    %1471 = vdwg.mxu0
    %1472 = vst [vmem:[%s20] sm:$0xff] %v1458
    %1473 = vst [vmem:[%s20 + $0x8] sm:$0xff] %v1461
    %1474 = vst [vmem:[%s20 + $0x10] sm:$0xff] %v1466
    %1475 = vst [vmem:[%s20 + $0x18] sm:$0xff] %v1469
  $region89: #{closed_call.8} parent=0 // pred_fallthru
    _
  // Predicated region
  $region90: #{closed_call.8} parent=0 // pred_check
    _
  $region91: #{closed_call.8} parent=0 // pred_check_branch
    %1477 = sbr.rel (0) target = $region93
  $region92: #{closed_call.8} parent=0 // pred_region
    _
  $region93: #{closed_call.8} parent=0 // pred_fallthru
    _
  // Predicated region
  $region94: #{closed_call.8} parent=0 // pred_check
    _
  $region95: #{closed_call.8} parent=0 // pred_check_branch
    %1479 = sbr.rel (0) target = $region97
  $region96: #{closed_call.8} parent=0 // pred_region
    _
  $region97: #{closed_call.8} parent=0 // pred_fallthru
    _

</llo_original>
